<compile_context>
chip_gen: v7x
topology: tpu7x:2x2x1
jax: 0.10.0
libtpu: 0.0.40
codegen_flags: <defaults>
</compile_context>

<pallas_src>
import jax
import jax.numpy as jnp
import numpy as np
from jax.experimental import pallas as pl
from jax.experimental.pallas import tpu as pltpu


def rgcn_kernel(scat_ref, st_ref, rel_ref, wwide_ref, wcomp_ref, selfwt_ref,
                bias_ref, out_ref):
    f32, bf16 = jnp.float32, jnp.bfloat16
    Nt, D = out_ref.shape               # stacked nodes, model_dim
    Et = st_ref.shape[0] // 2           # stacked edges
    R, B = wcomp_ref.shape

    lhs = scat_ref[...]                 # [Nt, D+Et] bf16: [node feats | one_hot(tgt)^T]
    inp = lhs[:, :D]                    # [Nt, D]   node features
    Tt = lhs[:, D:D + Et]               # [Nt, Et]  one_hot(tgt)^T
    S = st_ref[0:Et, :]                 # [Et, Nt]  one_hot(src)
    T = st_ref[Et:2 * Et, :]            # [Et, Nt]  one_hot(tgt)
    REL = rel_ref[...]                  # [Et, R]   one_hot(rel)

    # ---- critical-path head: src gather + single full-depth basis matmul ----
    # x[e] = inp[src[e]]  (one-hot gather; values stay exactly bf16-representable)
    x = jnp.dot(S, inp, preferred_element_type=f32)                        # [Et, D]
    # Y[e, b*D:(b+1)*D] = x[e] @ W_b ; issues immediately, does NOT wait on the
    # normalization chain below (post-matmul scaling).
    Y = jnp.dot(x.astype(bf16), wwide_ref[...],
                preferred_element_type=f32)                                # [Et, B*D]

    # ---- neighborhood-aware normalization + basis coefficients -------------
    # count[n, r] = #edges with tgt==n and rel==r  (small ints, exact in bf16)
    count = jnp.dot(Tt, REL, preferred_element_type=f32)                   # [Nt, R]
    cnt_e = jnp.dot(T, count.astype(bf16), preferred_element_type=f32)     # [Et, R]
    denum = jnp.sum(cnt_e * REL.astype(f32), axis=-1, keepdims=True)       # [Et, 1]
    # coef[e, b] = w_comp[rel[e], b] / denum[e]   (denum >= 1 always)
    coef = jnp.dot(REL, wcomp_ref[...], preferred_element_type=f32)        # [Et, B]
    coef = coef * pl.reciprocal(denum, approx=True)                        # f32 VPU + EUP

    # ---- post-matmul scaling over lane-aligned D-wide slices of Y -----------
    potential = coef[:, 0:1] * Y[:, 0:D]
    for b in range(1, B):
        potential = potential + coef[:, b:b + 1] * Y[:, b * D:(b + 1) * D]  # [Et, D] f32

    # ---- fused scatter-add over targets + self-edge projection + bias -------
    #   out = [inp | Tt] @ [self_W^T ; potential]    (one [Nt, D+Et]x[D+Et, D] dot)
    rhs = jnp.concatenate([selfwt_ref[...], potential.astype(bf16)], axis=0)  # [D+Et, D]
    out = jnp.dot(lhs, rhs, preferred_element_type=f32)                     # [Nt, D]
    out_ref[...] = out + bias_ref[...]


def relational_gcn(inp, src, tgt, rel, weight, w_comp, self_w, bias,
                   graphs_per_block=2):
    """inp [G,N,D] f32, src/tgt/rel [G,E] int, weight [B,D,D], w_comp [R,B],
    self_w [D,D], bias [D] -> out [G,N,D] f32."""
    G, N, D = inp.shape
    E = src.shape[1]
    B = weight.shape[0]
    R = w_comp.shape[0]
    Gb = graphs_per_block
    assert G % Gb == 0, "graphs_per_block must divide the number of graphs"
    NG = G // Gb                         # grid steps (keep >=2 for v7x's 2 TCs)
    Nt, Et = Gb * N, Gb * E              # stacked nodes / edges per grid step

    bf16 = jnp.bfloat16
    # Stack Gb graphs along the node/edge axis; offset node indices so the
    # one-hot gather/scatter matrices become block-diagonal (graphs stay
    # independent).  Assumes every one of the E edges is real; for
    # padded/ragged graphs a validity mask would have to be folded in here.
    offs = (jnp.arange(Gb, dtype=jnp.int32) * N)[None, :, None]            # [1, Gb, 1]
    src_g = (src.reshape(NG, Gb, E).astype(jnp.int32) + offs).reshape(NG, Et)
    tgt_g = (tgt.reshape(NG, Gb, E).astype(jnp.int32) + offs).reshape(NG, Et)
    rel_g = rel.reshape(NG, Et).astype(jnp.int32)

    inp_b = inp.reshape(NG, Nt, D).astype(bf16)
    S = jax.nn.one_hot(src_g, Nt, dtype=bf16)                              # [NG, Et, Nt]
    T = jax.nn.one_hot(tgt_g, Nt, dtype=bf16)                              # [NG, Et, Nt]
    Tt = jnp.swapaxes(T, 1, 2)                                             # [NG, Nt, Et]
    REL = jax.nn.one_hot(rel_g, R, dtype=bf16)                             # [NG, Et, R]

    st = jnp.concatenate([S, T], axis=1)                                   # [NG, 2Et, Nt]
    scat_lhs = jnp.concatenate([inp_b, Tt], axis=2)                        # [NG, Nt, D+Et]

    # w_wide[i, b*D + j] = weight[b, i, j]  ->  Y = x @ w_wide stacks all x @ W_b.
    w_wide = jnp.transpose(weight, (1, 0, 2)).reshape(D, B * D).astype(bf16)
    w_comp_b = w_comp.astype(bf16)
    self_wt = jnp.transpose(self_w).astype(bf16)                           # nn.Linear: x @ W.T
    bias2d = bias.reshape(1, D).astype(jnp.float32)

    flops_per_block = 2 * (Et * Nt * D            # src gather
                           + Et * D * B * D       # fused basis transform
                           + Nt * Et * R          # count scatter
                           + Et * Nt * R          # count gather
                           + Et * R * B           # basis coefficients
                           + Nt * (D + Et) * D    # fused scatter + self projection
                           + Et * B * D)          # post-matmul coef scaling
    bytes_accessed = (2 * NG * Nt * (D + Et)      # [inp | Tt] bf16
                      + 2 * NG * 2 * Et * Nt      # stacked src/tgt one-hots bf16
                      + 2 * NG * Et * R           # rel one-hot bf16
                      + 2 * D * B * D             # w_wide bf16
                      + 2 * R * B                 # w_comp bf16
                      + 2 * D * D                 # self weight bf16
                      + 4 * D                     # bias f32
                      + 4 * NG * Nt * D)          # output f32
    cost = pl.CostEstimate(flops=NG * flops_per_block,
                           transcendentals=NG * Et,
                           bytes_accessed=bytes_accessed)

    grid_spec = pltpu.PrefetchScalarGridSpec(
        num_scalar_prefetch=0,
        grid=(NG,),
        in_specs=[
            pl.BlockSpec((pl.Squeezed(), Nt, D + Et), lambda g: (g, 0, 0)),  # [inp | Tt]
            pl.BlockSpec((pl.Squeezed(), 2 * Et, Nt), lambda g: (g, 0, 0)),  # [S ; T]
            pl.BlockSpec((pl.Squeezed(), Et, R), lambda g: (g, 0, 0)),       # REL one-hot
            pl.BlockSpec((D, B * D), lambda g: (0, 0)),                      # stacked bases
            pl.BlockSpec((R, B), lambda g: (0, 0)),                          # w_comp
            pl.BlockSpec((D, D), lambda g: (0, 0)),                          # self weight^T
            pl.BlockSpec((1, D), lambda g: (0, 0)),                          # bias
        ],
        out_specs=pl.BlockSpec((pl.Squeezed(), Nt, D), lambda g: (g, 0, 0)),
    )

    out = pl.pallas_call(
        rgcn_kernel,
        out_shape=jax.ShapeDtypeStruct((NG, Nt, D), jnp.float32),
        grid_spec=grid_spec,
        compiler_params=pltpu.CompilerParams(
            dimension_semantics=("parallel",),
            vmem_limit_bytes=32 * 1024 * 1024),
        cost_estimate=cost,
    )(scat_lhs, st, REL, w_wide, w_comp_b, self_wt, bias2d)
    return out.reshape(G, N, D)


if __name__ == "__main__":
    # Batch of 4 small graphs: 16 nodes, 32 edges each, model_dim=128
    # (lane-dense), deprel_ext_size=8 relation types, base_size=4 bases.
    G, N, E, D, R, B = 4, 16, 32, 128, 8, 4

    key = jax.random.PRNGKey(0)
    k_inp, k_src, k_tgt, k_rel, k_w, k_wc, k_sw = jax.random.split(key, 7)

    inp = jax.random.normal(k_inp, (G, N, D), jnp.float32)
    src = jax.random.randint(k_src, (G, E), 0, N, dtype=jnp.int32)
    tgt = jax.random.randint(k_tgt, (G, E), 0, N, dtype=jnp.int32)
    rel = jax.random.randint(k_rel, (G, E), 0, R, dtype=jnp.int32)

    # Deterministic xavier-uniform-style parameter init (synthetic weights).
    bw = (6.0 / (D + D)) ** 0.5
    weight = jax.random.uniform(k_w, (B, D, D), jnp.float32, -bw, bw)
    bwc = (6.0 / (R + B)) ** 0.5
    w_comp = jax.random.uniform(k_wc, (R, B), jnp.float32, -bwc, bwc)
    self_w = jax.random.uniform(k_sw, (D, D), jnp.float32, -bw, bw)
    bias = jnp.zeros((D,), jnp.float32)   # nn.init.zeros_

    out = relational_gcn(inp, src, tgt, rel, weight, w_comp, self_w, bias,
                         graphs_per_block=2)
    out = jax.block_until_ready(out)

    # Pure-JAX f32 reference of the PyTorch forward (omit_self_edge=False path).
    W_full = (w_comp @ weight.reshape(B, D * D)).reshape(R, D, D)

    def ref_one(x, s, t, r):
        fx = x[s]                                    # index_select by src
        fw = W_full[r]                               # index_select by deprel
        pot = jnp.einsum('ei,eij->ej', fx, fw)
        rel_oh = jax.nn.one_hot(r, R, dtype=jnp.float32)
        count = jnp.zeros((N, R), jnp.float32).at[t].add(rel_oh)
        denum = count[t, r][:, None]
        pot = pot / denum
        o = jnp.zeros((N, D), jnp.float32).at[t].add(pot)
        return o + x @ self_w.T + bias

    ref = jax.vmap(ref_one)(inp, src, tgt, rel)

    # bf16 MXU operands + approx reciprocal vs. the f32 reference.
    np.testing.assert_allclose(np.asarray(out), np.asarray(ref),
                               rtol=4e-2, atol=4e-2)
    print("KERNEL_OK")
</pallas_src>

<mosaic_0001>
module attributes {stable_mosaic.version = 11 : i64} {
  func.func @rgcn_kernel(%arg0: i32, %arg1: memref<1x32x192xbf16, #tpu.memory_space<vmem>>, %arg2: memref<1x128x32xbf16, #tpu.memory_space<vmem>>, %arg3: memref<1x64x8xbf16, #tpu.memory_space<vmem>>, %arg4: memref<128x512xbf16, #tpu.memory_space<vmem>>, %arg5: memref<8x4xbf16, #tpu.memory_space<vmem>>, %arg6: memref<128x128xbf16, #tpu.memory_space<vmem>>, %arg7: memref<1x128xf32, #tpu.memory_space<vmem>>, %arg8: memref<1x32x128xf32, #tpu.memory_space<vmem>>) attributes {dimension_semantics = [#tpu.dimension_semantics<parallel>], iteration_bounds = array<i64: 2>, scalar_prefetch = 0 : i64, scratch_operands = 0 : i64, tpu.core_type = #tpu.core_type<tc>, window_params = [{transform_indices = @transform_0, window_bounds = array<i64: 1, 32, 192>}, {transform_indices = @transform_1, window_bounds = array<i64: 1, 128, 32>}, {transform_indices = @transform_2, window_bounds = array<i64: 1, 64, 8>}, {pipeline_mode = #tpu.pipeline_mode<synchronous>, transform_indices = @transform_3, window_bounds = array<i64: 128, 512>}, {pipeline_mode = #tpu.pipeline_mode<synchronous>, transform_indices = @transform_4, window_bounds = array<i64: 8, 4>}, {pipeline_mode = #tpu.pipeline_mode<synchronous>, transform_indices = @transform_5, window_bounds = array<i64: 128, 128>}, {pipeline_mode = #tpu.pipeline_mode<synchronous>, transform_indices = @transform_6, window_bounds = array<i64: 1, 128>}, {transform_indices = @transform_7, window_bounds = array<i64: 1, 32, 128>}]} {
    %c0 = arith.constant 0 : index
    %c0_0 = arith.constant 0 : index
    %c0_1 = arith.constant 0 : index
    %0 = vector.load %arg1[%c0, %c0_0, %c0_1] : memref<1x32x192xbf16, #tpu.memory_space<vmem>>, vector<1x32x192xbf16>
    %1 = vector.shape_cast %0 : vector<1x32x192xbf16> to vector<32x192xbf16>
    %2 = vector.extract_strided_slice %1 {offsets = [0, 0], sizes = [32, 128], strides = [1, 1]} : vector<32x192xbf16> to vector<32x128xbf16>
    %3 = vector.extract_strided_slice %1 {offsets = [0, 128], sizes = [32, 64], strides = [1, 1]} : vector<32x192xbf16> to vector<32x64xbf16>
    %c0_2 = arith.constant 0 : index
    %c0_3 = arith.constant 0 : index
    %c0_4 = arith.constant 0 : index
    %4 = vector.load %arg2[%c0_2, %c0_3, %c0_4] : memref<1x128x32xbf16, #tpu.memory_space<vmem>>, vector<1x64x32xbf16>
    %5 = vector.shape_cast %4 : vector<1x64x32xbf16> to vector<64x32xbf16>
    %c0_5 = arith.constant 0 : index
    %c64 = arith.constant 64 : index
    %c0_6 = arith.constant 0 : index
    %6 = vector.load %arg2[%c0_5, %c64, %c0_6] : memref<1x128x32xbf16, #tpu.memory_space<vmem>>, vector<1x64x32xbf16>
    %7 = vector.shape_cast %6 : vector<1x64x32xbf16> to vector<64x32xbf16>
    %c0_7 = arith.constant 0 : index
    %c0_8 = arith.constant 0 : index
    %c0_9 = arith.constant 0 : index
    %8 = vector.load %arg3[%c0_7, %c0_8, %c0_9] : memref<1x64x8xbf16, #tpu.memory_space<vmem>>, vector<1x64x8xbf16>
    %9 = vector.shape_cast %8 : vector<1x64x8xbf16> to vector<64x8xbf16>
    %cst = arith.constant dense<0.000000e+00> : vector<64x128xf32>
    %10 = tpu.matmul %5, %2, %cst {dimension_numbers = #tpu.dot_dimension_numbers<[1], [0], [0], [1], [0, 0, 1, 1], [], []>} : vector<64x32xbf16>, vector<32x128xbf16>, vector<64x128xf32> -> vector<64x128xf32>
    %11 = arith.truncf %10 : vector<64x128xf32> to vector<64x128xbf16>
    %c0_10 = arith.constant 0 : index
    %c0_11 = arith.constant 0 : index
    %12 = vector.load %arg4[%c0_10, %c0_11] : memref<128x512xbf16, #tpu.memory_space<vmem>>, vector<128x512xbf16>
    %cst_12 = arith.constant dense<0.000000e+00> : vector<64x512xf32>
    %13 = tpu.matmul %11, %12, %cst_12 {dimension_numbers = #tpu.dot_dimension_numbers<[1], [0], [0], [1], [0, 0, 1, 1], [], []>} : vector<64x128xbf16>, vector<128x512xbf16>, vector<64x512xf32> -> vector<64x512xf32>
    %cst_13 = arith.constant dense<0.000000e+00> : vector<32x8xf32>
    %14 = tpu.matmul %3, %9, %cst_13 {dimension_numbers = #tpu.dot_dimension_numbers<[1], [0], [0], [1], [0, 0, 1, 1], [], []>} : vector<32x64xbf16>, vector<64x8xbf16>, vector<32x8xf32> -> vector<32x8xf32>
    %15 = arith.truncf %14 : vector<32x8xf32> to vector<32x8xbf16>
    %cst_14 = arith.constant dense<0.000000e+00> : vector<64x8xf32>
    %16 = tpu.matmul %7, %15, %cst_14 {dimension_numbers = #tpu.dot_dimension_numbers<[1], [0], [0], [1], [0, 0, 1, 1], [], []>} : vector<64x32xbf16>, vector<32x8xbf16>, vector<64x8xf32> -> vector<64x8xf32>
    %17 = arith.extf %9 : vector<64x8xbf16> to vector<64x8xf32>
    %18 = arith.mulf %16, %17 : vector<64x8xf32>
    %cst_15 = arith.constant dense<0.000000e+00> : vector<64xf32>
    %19 = vector.multi_reduction <add>, %18, %cst_15 [1] : vector<64x8xf32> to vector<64xf32>
    %20 = vector.shape_cast %19 : vector<64xf32> to vector<64x1xf32>
    %c0_16 = arith.constant 0 : index
    %c0_17 = arith.constant 0 : index
    %21 = vector.load %arg5[%c0_16, %c0_17] : memref<8x4xbf16, #tpu.memory_space<vmem>>, vector<8x4xbf16>
    %cst_18 = arith.constant dense<0.000000e+00> : vector<64x4xf32>
    %22 = tpu.matmul %9, %21, %cst_18 {dimension_numbers = #tpu.dot_dimension_numbers<[1], [0], [0], [1], [0, 0, 1, 1], [], []>} : vector<64x8xbf16>, vector<8x4xbf16>, vector<64x4xf32> -> vector<64x4xf32>
    %23 = tpu.reciprocal %20 {approx = true} : vector<64x1xf32> -> vector<64x1xf32>
    %24 = vector.broadcast %23 : vector<64x1xf32> to vector<64x4xf32>
    %25 = arith.mulf %22, %24 : vector<64x4xf32>
    %26 = vector.extract_strided_slice %25 {offsets = [0, 0], sizes = [64, 1], strides = [1, 1]} : vector<64x4xf32> to vector<64x1xf32>
    %27 = vector.extract_strided_slice %13 {offsets = [0, 0], sizes = [64, 128], strides = [1, 1]} : vector<64x512xf32> to vector<64x128xf32>
    %28 = vector.broadcast %26 : vector<64x1xf32> to vector<64x128xf32>
    %29 = arith.mulf %28, %27 : vector<64x128xf32>
    %30 = vector.extract_strided_slice %25 {offsets = [0, 1], sizes = [64, 1], strides = [1, 1]} : vector<64x4xf32> to vector<64x1xf32>
    %31 = vector.extract_strided_slice %13 {offsets = [0, 128], sizes = [64, 128], strides = [1, 1]} : vector<64x512xf32> to vector<64x128xf32>
    %32 = vector.broadcast %30 : vector<64x1xf32> to vector<64x128xf32>
    %33 = arith.mulf %32, %31 : vector<64x128xf32>
    %34 = arith.addf %29, %33 : vector<64x128xf32>
    %35 = vector.extract_strided_slice %25 {offsets = [0, 2], sizes = [64, 1], strides = [1, 1]} : vector<64x4xf32> to vector<64x1xf32>
    %36 = vector.extract_strided_slice %13 {offsets = [0, 256], sizes = [64, 128], strides = [1, 1]} : vector<64x512xf32> to vector<64x128xf32>
    %37 = vector.broadcast %35 : vector<64x1xf32> to vector<64x128xf32>
    %38 = arith.mulf %37, %36 : vector<64x128xf32>
    %39 = arith.addf %34, %38 : vector<64x128xf32>
    %40 = vector.extract_strided_slice %25 {offsets = [0, 3], sizes = [64, 1], strides = [1, 1]} : vector<64x4xf32> to vector<64x1xf32>
    %41 = vector.extract_strided_slice %13 {offsets = [0, 384], sizes = [64, 128], strides = [1, 1]} : vector<64x512xf32> to vector<64x128xf32>
    %42 = vector.broadcast %40 : vector<64x1xf32> to vector<64x128xf32>
    %43 = arith.mulf %42, %41 : vector<64x128xf32>
    %44 = arith.addf %39, %43 : vector<64x128xf32>
    %c0_19 = arith.constant 0 : index
    %c0_20 = arith.constant 0 : index
    %45 = vector.load %arg6[%c0_19, %c0_20] : memref<128x128xbf16, #tpu.memory_space<vmem>>, vector<128x128xbf16>
    %46 = arith.truncf %44 : vector<64x128xf32> to vector<64x128xbf16>
    %47 = tpu.concatenate %45, %46 in 0 : vector<128x128xbf16>, vector<64x128xbf16> -> vector<192x128xbf16>
    %cst_21 = arith.constant dense<0.000000e+00> : vector<32x128xf32>
    %48 = tpu.matmul %1, %47, %cst_21 {dimension_numbers = #tpu.dot_dimension_numbers<[1], [0], [0], [1], [0, 0, 1, 1], [], []>} : vector<32x192xbf16>, vector<192x128xbf16>, vector<32x128xf32> -> vector<32x128xf32>
    %c0_22 = arith.constant 0 : index
    %c0_23 = arith.constant 0 : index
    %49 = vector.load %arg7[%c0_22, %c0_23] : memref<1x128xf32, #tpu.memory_space<vmem>>, vector<1x128xf32>
    %50 = vector.broadcast %49 : vector<1x128xf32> to vector<32x128xf32>
    %51 = arith.addf %48, %50 : vector<32x128xf32>
    %c0_24 = arith.constant 0 : index
    %c0_25 = arith.constant 0 : index
    %c0_26 = arith.constant 0 : index
    %52 = vector.load %arg8[%c0_24, %c0_25, %c0_26] : memref<1x32x128xf32, #tpu.memory_space<vmem>>, vector<1x32x128xf32>
    %53 = vector.shape_cast %52 : vector<1x32x128xf32> to vector<32x128xf32>
    %54 = vector.shape_cast %51 : vector<32x128xf32> to vector<1x32x128xf32>
    tpu.vector_store %arg8[%c0_24, %c0_25, %c0_26], %54 {strides = array<i32>} : memref<1x32x128xf32, #tpu.memory_space<vmem>>, vector<1x32x128xf32>,
    return
  }
  func.func @transform_0(%arg0: i32) -> (i32, i32, i32) {
    %c0_i32 = arith.constant 0 : i32
    %c0_i32_0 = arith.constant 0 : i32
    %c0_i32_1 = arith.constant 0 : i32
    return %arg0, %c0_i32, %c0_i32_0 : i32, i32, i32
  }
  func.func @transform_1(%arg0: i32) -> (i32, i32, i32) {
    %c0_i32 = arith.constant 0 : i32
    %c0_i32_0 = arith.constant 0 : i32
    %c0_i32_1 = arith.constant 0 : i32
    return %arg0, %c0_i32, %c0_i32_0 : i32, i32, i32
  }
  func.func @transform_2(%arg0: i32) -> (i32, i32, i32) {
    %c0_i32 = arith.constant 0 : i32
    %c0_i32_0 = arith.constant 0 : i32
    %c0_i32_1 = arith.constant 0 : i32
    return %arg0, %c0_i32, %c0_i32_0 : i32, i32, i32
  }
  func.func @transform_3(%arg0: i32) -> (i32, i32) {
    %c0_i32 = arith.constant 0 : i32
    %c0_i32_0 = arith.constant 0 : i32
    %c0_i32_1 = arith.constant 0 : i32
    return %c0_i32, %c0_i32_0 : i32, i32
  }
  func.func @transform_4(%arg0: i32) -> (i32, i32) {
    %c0_i32 = arith.constant 0 : i32
    %c0_i32_0 = arith.constant 0 : i32
    %c0_i32_1 = arith.constant 0 : i32
    return %c0_i32, %c0_i32_0 : i32, i32
  }
  func.func @transform_5(%arg0: i32) -> (i32, i32) {
    %c0_i32 = arith.constant 0 : i32
    %c0_i32_0 = arith.constant 0 : i32
    %c0_i32_1 = arith.constant 0 : i32
    return %c0_i32, %c0_i32_0 : i32, i32
  }
  func.func @transform_6(%arg0: i32) -> (i32, i32) {
    %c0_i32 = arith.constant 0 : i32
    %c0_i32_0 = arith.constant 0 : i32
    %c0_i32_1 = arith.constant 0 : i32
    return %c0_i32, %c0_i32_0 : i32, i32
  }
  func.func @transform_7(%arg0: i32) -> (i32, i32, i32) {
    %c0_i32 = arith.constant 0 : i32
    %c0_i32_0 = arith.constant 0 : i32
    %c0_i32_1 = arith.constant 0 : i32
    return %arg0, %c0_i32, %c0_i32_0 : i32, i32, i32
  }
}

</mosaic_0001>

<llo_original>
// kernel: tpu_custom_call.1
$region0: #{tpu_custom_call.1}
  #allocation0 [shape = 'u32[]', space=smem, size = 0x4, offset = 0x4, fixed_abs, tag = 'smem constant byte address 0x4 - core index']
  #allocation1 [shape = 'u32[144,128]{1,0:T(1,128)}', space=vmem, size = 0x12000, scoped, tag = 'internal scratch']
  %s0 = inlined_call_operand.vmem [shape: bf16[2,32,192], index: 0, kind: input, shape index: {}]
  %s1 = inlined_call_operand.vmem [shape: bf16[2,128,32], index: 1, kind: input, shape index: {}]
  %s2 = inlined_call_operand.vmem [shape: bf16[2,64,8], index: 2, kind: input, shape index: {}]
  %s3 = inlined_call_operand.hbm [shape: bf16[128,512], index: 3, kind: input, shape index: {}]
  %s4 = inlined_call_operand.vmem [shape: bf16[8,4], index: 4, kind: input, shape index: {}]
  %s5 = inlined_call_operand.vmem [shape: bf16[128,128], index: 5, kind: input, shape index: {}]
  %s6 = inlined_call_operand.vmem [shape: f32[1,128], index: 6, kind: input, shape index: {}]
  %s7 = inlined_call_operand.hbm [shape: f32[2,32,128], index: 7, kind: output, shape index: {}]
  %s8 = sld [smem:[#allocation0]]
  $region65: #{tpu_custom_call.1} parent=0
    _
  %s10 = ssub.s32 1, %s8
  %s11 = scalar_select 0, %s10, %s8
  $region1: #{tpu_custom_call.1} parent=0
    #allocation2 [shape = 'u8[131072]{0}', space=vmem, size = 0x20000, scoped, tag = 'input window, operand 3, single buffered']
    #allocation3 [shape = 's32[2]{0}', space=sflag, size = 0x8, scoped, tag = 'scoped memory for tpu_custom_call.1']
    #allocation4 [shape = 's32[2]{0}', space=sflag, size = 0x8, scoped, tag = 'scoped memory for tpu_custom_call.1']
    #allocation5 [shape = 'u8[32768]{0}', space=vmem, size = 0x8000, scoped, tag = 'output window, operand 0']
    %12 = vsyncpa [#allocation3], 0
    %13 = vsyncpa [#allocation4], 0
    %s14 = scalar_lea.sflag [#allocation4], 1
    %15 = vsyncpa %s14, 0
    loop: start=0, step=1, limit=4
    $region2: #{tpu_custom_call.1} parent=1 // loop_pre_header
      _
    $region3: #{tpu_custom_call.1} parent=1 // loop_header
      %s17 = sphi 0, %s21
      %p18 = scmp.ge.s32.totalorder %s17, 4
      %s27 = sphi 0, %s29
      %s30 = sphi 0, %s27
      %s31 = sphi 0, %s30
      %s47 = sphi 0, %s31
      %s53 = sphi 0, %s55
      %s56 = sphi 0, %s53
      %s57 = sphi 0, %s56
      %s73 = sphi 0, %s57
      %s79 = sphi 0, %s81
      %s82 = sphi 0, %s79
      %s83 = sphi 0, %s82
      %s99 = sphi 0, %s83
      %s103 = sphi 0, %s103
      %s105 = sphi 0, %s103
      %s106 = sphi 0, %s105
      %s120 = sphi 0, %s106
      %s124 = sphi 0, %s124
      %s126 = sphi 0, %s124
      %s127 = sphi 0, %s126
      %s141 = sphi 0, %s127
      %s145 = sphi 0, %s145
      %s147 = sphi 0, %s145
      %s148 = sphi 0, %s147
      %s162 = sphi 0, %s148
      %s166 = sphi 0, %s166
      %s168 = sphi 0, %s166
      %s169 = sphi 0, %s168
      %s183 = sphi 0, %s169
      %s189 = sphi 0, %s191
      %s192 = sphi 0, %s189
      %s193 = sphi 0, %s192
      %s209 = sphi 0, %s193
    $region4: #{tpu_custom_call.1} parent=1 // loop_header_branch
      %20 = sbr.rel (%p18) target = $region8
    $region5: #{tpu_custom_call.1} parent=1 // loop_body
      %s22 = ssub.s32 %s17, 1
      %s23 = ssub.s32 %s17, 2
      %s24 = sadd.s32 %s17, 1
      %s25 = ssub.s32 %s17, %s24
      %p26 = scmp.eq.s32.totalorder %s25, 0
      %s28 = sadd.s32 %s27, 1
      %s29 = scalar_select %p26, %s27, %s28
      %p32 = pneg %p26
      %p33 = scmp.eq.s32.totalorder %s17, 1
      %p34 = por %p32, %p33
      %p35 = scmp.ne.s32.totalorder %s27, %s30
      %p36 = scmp.eq.s32.totalorder %s17, 0
      %p37 = por %p35, %p36
      %p38 = scmp.ne.s32.totalorder %s27, %s30
      %p39 = scmp.eq.s32.totalorder %s22, 1
      %p40 = por %p38, %p39
      %p41 = scmp.ne.s32.totalorder %s30, %s31
      %p42 = scmp.eq.s32.totalorder %s22, 0
      %p43 = por %p41, %p42
      %p44 = scmp.ne.s32.totalorder %s30, %s31
      %p45 = scmp.eq.s32.totalorder %s23, 1
      %p46 = por %p44, %p45
      %p48 = scmp.ne.s32.totalorder %s31, %s47
      %p49 = scmp.eq.s32.totalorder %s23, 0
      %p50 = por %p48, %p49
      %s51 = ssub.s32 %s17, %s24
      %p52 = scmp.eq.s32.totalorder %s51, 0
      %s54 = sadd.s32 %s53, 1
      %s55 = scalar_select %p52, %s53, %s54
      %p58 = pneg %p52
      %p59 = scmp.eq.s32.totalorder %s17, 1
      %p60 = por %p58, %p59
      %p61 = scmp.ne.s32.totalorder %s53, %s56
      %p62 = scmp.eq.s32.totalorder %s17, 0
      %p63 = por %p61, %p62
      %p64 = scmp.ne.s32.totalorder %s53, %s56
      %p65 = scmp.eq.s32.totalorder %s22, 1
      %p66 = por %p64, %p65
      %p67 = scmp.ne.s32.totalorder %s56, %s57
      %p68 = scmp.eq.s32.totalorder %s22, 0
      %p69 = por %p67, %p68
      %p70 = scmp.ne.s32.totalorder %s56, %s57
      %p71 = scmp.eq.s32.totalorder %s23, 1
      %p72 = por %p70, %p71
      %p74 = scmp.ne.s32.totalorder %s57, %s73
      %p75 = scmp.eq.s32.totalorder %s23, 0
      %p76 = por %p74, %p75
      %s77 = ssub.s32 %s17, %s24
      %p78 = scmp.eq.s32.totalorder %s77, 0
      %s80 = sadd.s32 %s79, 1
      %s81 = scalar_select %p78, %s79, %s80
      %p84 = pneg %p78
      %p85 = scmp.eq.s32.totalorder %s17, 1
      %p86 = por %p84, %p85
      %p87 = scmp.ne.s32.totalorder %s79, %s82
      %p88 = scmp.eq.s32.totalorder %s17, 0
      %p89 = por %p87, %p88
      %p90 = scmp.ne.s32.totalorder %s79, %s82
      %p91 = scmp.eq.s32.totalorder %s22, 1
      %p92 = por %p90, %p91
      %p93 = scmp.ne.s32.totalorder %s82, %s83
      %p94 = scmp.eq.s32.totalorder %s22, 0
      %p95 = por %p93, %p94
      %p96 = scmp.ne.s32.totalorder %s82, %s83
      %p97 = scmp.eq.s32.totalorder %s23, 1
      %p98 = por %p96, %p97
      %p100 = scmp.ne.s32.totalorder %s83, %s99
      %p101 = scmp.eq.s32.totalorder %s23, 0
      %p102 = por %p100, %p101
      %s104 = sadd.s32 %s103, 1
      %p107 = scmp.eq.s32.totalorder %s17, 1
      %p108 = scmp.ne.s32.totalorder %s103, %s105
      %p109 = scmp.eq.s32.totalorder %s17, 0
      %p110 = por %p108, %p109
      %p111 = scmp.ne.s32.totalorder %s103, %s105
      %p112 = scmp.eq.s32.totalorder %s22, 1
      %p113 = por %p111, %p112
      %p114 = scmp.ne.s32.totalorder %s105, %s106
      %p115 = scmp.eq.s32.totalorder %s22, 0
      %p116 = por %p114, %p115
      %p117 = scmp.ne.s32.totalorder %s105, %s106
      %p118 = scmp.eq.s32.totalorder %s23, 1
      %p119 = por %p117, %p118
      %p121 = scmp.ne.s32.totalorder %s106, %s120
      %p122 = scmp.eq.s32.totalorder %s23, 0
      %p123 = por %p121, %p122
      %s125 = sadd.s32 %s124, 1
      %p128 = scmp.eq.s32.totalorder %s17, 1
      %p129 = scmp.ne.s32.totalorder %s124, %s126
      %p130 = scmp.eq.s32.totalorder %s17, 0
      %p131 = por %p129, %p130
      %p132 = scmp.ne.s32.totalorder %s124, %s126
      %p133 = scmp.eq.s32.totalorder %s22, 1
      %p134 = por %p132, %p133
      %p135 = scmp.ne.s32.totalorder %s126, %s127
      %p136 = scmp.eq.s32.totalorder %s22, 0
      %p137 = por %p135, %p136
      %p138 = scmp.ne.s32.totalorder %s126, %s127
      %p139 = scmp.eq.s32.totalorder %s23, 1
      %p140 = por %p138, %p139
      %p142 = scmp.ne.s32.totalorder %s127, %s141
      %p143 = scmp.eq.s32.totalorder %s23, 0
      %p144 = por %p142, %p143
      %s146 = sadd.s32 %s145, 1
      %p149 = scmp.eq.s32.totalorder %s17, 1
      %p150 = scmp.ne.s32.totalorder %s145, %s147
      %p151 = scmp.eq.s32.totalorder %s17, 0
      %p152 = por %p150, %p151
      %p153 = scmp.ne.s32.totalorder %s145, %s147
      %p154 = scmp.eq.s32.totalorder %s22, 1
      %p155 = por %p153, %p154
      %p156 = scmp.ne.s32.totalorder %s147, %s148
      %p157 = scmp.eq.s32.totalorder %s22, 0
      %p158 = por %p156, %p157
      %p159 = scmp.ne.s32.totalorder %s147, %s148
      %p160 = scmp.eq.s32.totalorder %s23, 1
      %p161 = por %p159, %p160
      %p163 = scmp.ne.s32.totalorder %s148, %s162
      %p164 = scmp.eq.s32.totalorder %s23, 0
      %p165 = por %p163, %p164
      %s167 = sadd.s32 %s166, 1
      %p170 = scmp.eq.s32.totalorder %s17, 1
      %p171 = scmp.ne.s32.totalorder %s166, %s168
      %p172 = scmp.eq.s32.totalorder %s17, 0
      %p173 = por %p171, %p172
      %p174 = scmp.ne.s32.totalorder %s166, %s168
      %p175 = scmp.eq.s32.totalorder %s22, 1
      %p176 = por %p174, %p175
      %p177 = scmp.ne.s32.totalorder %s168, %s169
      %p178 = scmp.eq.s32.totalorder %s22, 0
      %p179 = por %p177, %p178
      %p180 = scmp.ne.s32.totalorder %s168, %s169
      %p181 = scmp.eq.s32.totalorder %s23, 1
      %p182 = por %p180, %p181
      %p184 = scmp.ne.s32.totalorder %s169, %s183
      %p185 = scmp.eq.s32.totalorder %s23, 0
      %p186 = por %p184, %p185
      %s187 = ssub.s32 %s17, %s24
      %p188 = scmp.eq.s32.totalorder %s187, 0
      %s190 = sadd.s32 %s189, 1
      %s191 = scalar_select %p188, %s189, %s190
      %p194 = pneg %p188
      %p195 = scmp.eq.s32.totalorder %s17, 1
      %p196 = por %p194, %p195
      %p197 = scmp.ne.s32.totalorder %s189, %s192
      %p198 = scmp.eq.s32.totalorder %s17, 0
      %p199 = por %p197, %p198
      %p200 = scmp.ne.s32.totalorder %s189, %s192
      %p201 = scmp.eq.s32.totalorder %s22, 1
      %p202 = por %p200, %p201
      %p203 = scmp.ne.s32.totalorder %s192, %s193
      %p204 = scmp.eq.s32.totalorder %s22, 0
      %p205 = por %p203, %p204
      %p206 = scmp.ne.s32.totalorder %s192, %s193
      %p207 = scmp.eq.s32.totalorder %s23, 1
      %p208 = por %p206, %p207
      %p210 = scmp.ne.s32.totalorder %s193, %s209
      %p211 = scmp.eq.s32.totalorder %s23, 0
      %p212 = por %p210, %p211
      %p213 = scmp.le.s32.totalorder 1, %s17
      %p214 = scmp.lt.s32.totalorder %s17, 3
      %p215 = pnand %p213, %p214
      %p216 = pneg %p215
      // Predicated region
      $region9: #{tpu_custom_call.1} parent=5 // pred_check
        _
      $region10: #{tpu_custom_call.1} parent=5 // pred_check_branch
        %218 = sbr.rel (%p215) target = $region12
      $region11: #{tpu_custom_call.1} parent=5 // pred_region
        %s219 = ssub.s32 %s17, 1
        // Predicated region
        $region13: #{tpu_custom_call.1} parent=11 // pred_check
          %p220 = pneg %p116
        $region14: #{tpu_custom_call.1} parent=11 // pred_check_branch
          %222 = sbr.rel (%p220) target = $region16
        $region15: #{tpu_custom_call.1} parent=11 // pred_region
          %s224 = ssub.s32 4096, 4096
          %225 = vsyncadd [#allocation3], %s224
          %s226 = sshll.u32 [#allocation2], 4
          %s227 = int_to_ptr.vmem [resolvable:$true] %s226
          %232 = dma.hbm_to_vmem [thread:$0]  %s3, 4096, %s227, [#allocation3], 256, 256, 16
        $region16: #{tpu_custom_call.1} parent=11 // pred_fallthru
          _
        // Predicated region
        $region17: #{tpu_custom_call.1} parent=11 // pred_check
          %p233 = pneg %p137
        $region18: #{tpu_custom_call.1} parent=11 // pred_check_branch
          %235 = sbr.rel (%p233) target = $region20
        $region19: #{tpu_custom_call.1} parent=11 // pred_region
          _
        $region20: #{tpu_custom_call.1} parent=11 // pred_fallthru
          _
        // Predicated region
        $region21: #{tpu_custom_call.1} parent=11 // pred_check
          %p236 = pneg %p158
        $region22: #{tpu_custom_call.1} parent=11 // pred_check_branch
          %238 = sbr.rel (%p236) target = $region24
        $region23: #{tpu_custom_call.1} parent=11 // pred_region
          _
        $region24: #{tpu_custom_call.1} parent=11 // pred_fallthru
          _
        // Predicated region
        $region25: #{tpu_custom_call.1} parent=11 // pred_check
          %p239 = pneg %p179
        $region26: #{tpu_custom_call.1} parent=11 // pred_check_branch
          %241 = sbr.rel (%p239) target = $region28
        $region27: #{tpu_custom_call.1} parent=11 // pred_region
          _
        $region28: #{tpu_custom_call.1} parent=11 // pred_fallthru
          _
      $region12: #{tpu_custom_call.1} parent=5 // pred_fallthru
        _
      %p242 = scmp.lt.s32.totalorder %s17, 2
      // Predicated region
      $region29: #{tpu_custom_call.1} parent=5 // pred_check
        %p243 = pneg %p242
      $region30: #{tpu_custom_call.1} parent=5 // pred_check_branch
        %245 = sbr.rel (%p243) target = $region32
      $region31: #{tpu_custom_call.1} parent=5 // pred_region
        // Predicated region
        $region33: #{tpu_custom_call.1} parent=31 // pred_check
          %p246 = pneg %p37
        $region34: #{tpu_custom_call.1} parent=31 // pred_check_branch
          %248 = sbr.rel (%p246) target = $region36
        $region35: #{tpu_custom_call.1} parent=31 // pred_region
          %p249 = scmp.lt.s32.totalorder %s17, 1
          %s250 = scalar_select %p249, %s17, 1
          %s251 = smul.addr %s250, 8
          %s252 = smul.addr %s251, 4
          %s253 = scalar_lea.vmem %s0, %s252
        $region36: #{tpu_custom_call.1} parent=31 // pred_fallthru
          _
        // Predicated region
        $region37: #{tpu_custom_call.1} parent=31 // pred_check
          %p254 = pneg %p63
        $region38: #{tpu_custom_call.1} parent=31 // pred_check_branch
          %256 = sbr.rel (%p254) target = $region40
        $region39: #{tpu_custom_call.1} parent=31 // pred_region
          %p257 = scmp.lt.s32.totalorder %s17, 1
          %s258 = scalar_select %p257, %s17, 1
          %s259 = smul.addr %s258, 16
          %s260 = smul.addr %s259, 4
          %s261 = scalar_lea.vmem %s1, %s260
        $region40: #{tpu_custom_call.1} parent=31 // pred_fallthru
          _
        // Predicated region
        $region41: #{tpu_custom_call.1} parent=31 // pred_check
          %p262 = pneg %p89
        $region42: #{tpu_custom_call.1} parent=31 // pred_check_branch
          %264 = sbr.rel (%p262) target = $region44
        $region43: #{tpu_custom_call.1} parent=31 // pred_region
          %p265 = scmp.lt.s32.totalorder %s17, 1
          %s266 = scalar_select %p265, %s17, 1
          %s267 = smul.addr %s266, 8
          %s268 = smul.addr %s267, 4
          %s269 = scalar_lea.vmem %s2, %s268
        $region44: #{tpu_custom_call.1} parent=31 // pred_fallthru
          _
      $region32: #{tpu_custom_call.1} parent=5 // pred_fallthru
        _
      %p270 = scmp.le.s32.totalorder 1, %s17
      %p271 = scmp.lt.s32.totalorder %s17, 3
      %p272 = pnand %p270, %p271
      %p273 = pneg %p272
      // Predicated region
      $region45: #{tpu_custom_call.1} parent=5 // pred_check
        _
      $region46: #{tpu_custom_call.1} parent=5 // pred_check_branch
        %275 = sbr.rel (%p272) target = $region48
      $region47: #{tpu_custom_call.1} parent=5 // pred_region
        %s276 = ssub.s32 %s17, 1
        // Predicated region
        $region49: #{tpu_custom_call.1} parent=47 // pred_check
          %p277 = pneg %p116
        $region50: #{tpu_custom_call.1} parent=47 // pred_check_branch
          %279 = sbr.rel (%p277) target = $region52
        $region51: #{tpu_custom_call.1} parent=47 // pred_region
          %280 = dma.done [#allocation3], 4096
        $region52: #{tpu_custom_call.1} parent=47 // pred_fallthru
          _
        %p281 = scmp.lt.s32.totalorder %s22, 1
        %s282 = scalar_select %p281, %s22, 1
        %s283 = smul.addr %s282, 8
        %s284 = smul.addr %s283, 4
        %s285 = scalar_lea.vmem %s0, %s284
        %p286 = pneg %p43
        %p287 = pneg %p40
        %p288 = scmp.lt.s32.totalorder %s22, 1
        %s289 = scalar_select %p288, %s22, 1
        %s290 = smul.addr %s289, 16
        %s291 = smul.addr %s290, 4
        %s292 = scalar_lea.vmem %s1, %s291
        %p293 = pneg %p69
        %p294 = pneg %p66
        %p295 = scmp.lt.s32.totalorder %s22, 1
        %s296 = scalar_select %p295, %s22, 1
        %s297 = smul.addr %s296, 8
        %s298 = smul.addr %s297, 4
        %s299 = scalar_lea.vmem %s2, %s298
        %p300 = pneg %p95
        %p301 = pneg %p92
        %p302 = pneg %p116
        %p303 = pneg %p113
        %p304 = pneg %p137
        %p305 = pneg %p134
        %p306 = pneg %p158
        %p307 = pneg %p155
        %p308 = pneg %p179
        %p309 = pneg %p176
        %p310 = pneg %p205
        %p311 = pneg %p202
        %s312 = sand.u32 %s192, 1
        %s313 = scalar_lea.sflag [#allocation4], %s312
        %s314 = sand.u32 %s192, 1
        %s315 = smul.addr %s314, 32
        %s316 = scalar_lea.vmem [#allocation5], %s315
        %p317 = scmp.lt.s32.totalorder %s22, 1
        %s318 = scalar_select %p317, %s22, 1
        %s319 = smul.addr %s318, 8
        %s320 = smul.addr %s319, 4
        %s321 = scalar_lea.vmem %s0, %s320
        %p322 = scmp.lt.s32.totalorder %s22, 1
        %s323 = scalar_select %p322, %s22, 1
        %s324 = smul.addr %s323, 16
        %s325 = smul.addr %s324, 4
        %s326 = scalar_lea.vmem %s1, %s325
        %p327 = scmp.lt.s32.totalorder %s22, 1
        %s328 = scalar_select %p327, %s22, 1
        %s329 = smul.addr %s328, 8
        %s330 = smul.addr %s329, 4
        %s331 = scalar_lea.vmem %s2, %s330
        %v333 = vld [vmem:[%s321] sm:$0xff]
        %v334 = vld [vmem:[%s321 + $0x8] sm:$0xff]
        %v335 = vld [vmem:[%s321 + $0x10] sm:$0xff]
        %v336 = vld [vmem:[%s321 + $0x18] sm:$0xff]
        %v337 = vld [vmem:[%s326] sm:$0xf]
        %v338 = vld [vmem:[%s326 + $0x4] sm:$0xf]
        %v339 = vld [vmem:[%s326 + $0x8] sm:$0xf]
        %v340 = vld [vmem:[%s326 + $0xc] sm:$0xf]
        %v341 = vld [vmem:[%s326 + $0x10] sm:$0xf]
        %v342 = vld [vmem:[%s326 + $0x14] sm:$0xf]
        %v343 = vld [vmem:[%s326 + $0x18] sm:$0xf]
        %v344 = vld [vmem:[%s326 + $0x1c] sm:$0xf]
        %v345 = vld [vmem:[%s326 + $0x20] sm:$0xf]
        %v346 = vld [vmem:[%s326 + $0x24] sm:$0xf]
        %v347 = vld [vmem:[%s326 + $0x28] sm:$0xf]
        %v348 = vld [vmem:[%s326 + $0x2c] sm:$0xf]
        %v349 = vld [vmem:[%s326 + $0x30] sm:$0xf]
        %v350 = vld [vmem:[%s326 + $0x34] sm:$0xf]
        %v351 = vld [vmem:[%s326 + $0x38] sm:$0xf]
        %v352 = vld [vmem:[%s326 + $0x3c] sm:$0xf]
        %v353 = vld [vmem:[%s331] sm:$0xf]
        %v354 = vld [vmem:[%s331 + $0x4] sm:$0xf]
        %v355 = vld [vmem:[%s331 + $0x8] sm:$0xf]
        %v356 = vld [vmem:[%s331 + $0xc] sm:$0xf]
        %v357 = vld [vmem:[%s331 + $0x10] sm:$0xf]
        %v358 = vld [vmem:[%s331 + $0x14] sm:$0xf]
        %v359 = vld [vmem:[%s331 + $0x18] sm:$0xf]
        %v360 = vld [vmem:[%s331 + $0x1c] sm:$0xf]
        %v369 = vunpack.c.l.b16 %v337
        %v370 = vunpack.c.l.b16 %v338
        %v371 = vunpack.c.l.b16 %v339
        %v372 = vunpack.c.l.b16 %v340
        %v373 = vunpack.c.l.b16 %v341
        %v374 = vunpack.c.l.b16 %v342
        %v375 = vunpack.c.l.b16 %v343
        %v376 = vunpack.c.l.b16 %v344
        %v377 = vpack.c.b16 %v370, %v369
        %v378 = vpack.c.b16 %v372, %v371
        %v379 = vpack.c.b16 %v374, %v373
        %v380 = vpack.c.b16 %v376, %v375
        %v385 = vunpack.c.l.b16 %v333
        %v386 = vunpack.c.l.b16 %v334
        %v387 = vunpack.c.l.b16 %v335
        %v388 = vunpack.c.l.b16 %v336
        %v389 = vpack.c.b16 %v386, %v385
        %v390 = vpack.c.b16 %v388, %v387
        %vm393 = vcmask 261120
        %v395 = vsel %vm393, %v377, 0
        %v398 = vsel %vm393, %v378, 0
        %v401 = vsel %vm393, %v379, 0
        %v404 = vsel %vm393, %v380, 0
        %406 = vmatprep.subr.bf16.mxu0 0
        %407 = vmatpush1.bf16.msra.mxu0 %v389
        %408 = vmatprep.subr.bf16.mxu0 0
        %409 = vmatpush1.bf16.msra.mxu0 %v390
        %410 = vmatprep.subr.bf16.mxu0 0
        %411 = vmatpush1.bf16.msra.mxu0 0
        %412 = vmatprep.subr.bf16.mxu0 0
        %413 = vmatpush1.bf16.msra.mxu0 0
        %414 = vmatprep.subr.bf16.mxu0 0
        %415 = vmatpush1.bf16.msra.mxu0 0
        %416 = vmatprep.subr.bf16.mxu0 0
        %417 = vmatpush1.bf16.msra.mxu0 0
        %418 = vmatprep.subr.bf16.mxu0 0
        %419 = vmatpush1.bf16.msra.mxu0 0
        %420 = vmatprep.subr.bf16.mxu0 0
        %421 = vmatpush1.bf16.msra.mxu0 0
        %422 = vmatprep.subr.bf16.mxu0 0
        %423 = vmatpush1.bf16.msra.mxu0 0
        %424 = vmatprep.subr.bf16.mxu0 0
        %425 = vmatpush1.bf16.msra.mxu0 0
        %426 = vmatprep.subr.bf16.mxu0 0
        %427 = vmatpush1.bf16.msra.mxu0 0
        %428 = vmatprep.subr.bf16.mxu0 0
        %429 = vmatpush1.bf16.msra.mxu0 0
        %430 = vmatprep.subr.bf16.mxu0 0
        %431 = vmatpush1.bf16.msra.mxu0 0
        %432 = vmatprep.subr.bf16.mxu0 0
        %433 = vmatpush1.bf16.msra.mxu0 0
        %434 = vmatprep.subr.bf16.mxu0 0
        %435 = vmatpush1.bf16.msra.mxu0 0
        %436 = vmatprep.subr.bf16.mxu0 0
        %437 = vmatpush1.bf16.msra.mxu0 0
        %438 = vmatprep.mubr.bf16.mxu0 0
        %439 = vmatmul.mubr.bf16.gmra.mrb[0].mxu0 %v395
        %v440 = vpop.f32.mrb[0].mxu0
        %v441 = vadd.f32 0.0, %v440
        %v442 = vpop.f32.mrb[0].mxu0
        %v443 = vpop.f32.mrb[0].mxu0
        %v444 = vadd.f32 0.0, %v443
        %v445 = vpop.f32.mrb[0].mxu0
        %446 = vmatprep.mubr.bf16.mxu0 0
        %447 = vmatmul.mubr.bf16.gmra.mrb[0].mxu0 %v398
        %v448 = vpop.f32.mrb[0].mxu0
        %v449 = vadd.f32 0.0, %v448
        %v450 = vpop.f32.mrb[0].mxu0
        %v451 = vpop.f32.mrb[0].mxu0
        %v452 = vadd.f32 0.0, %v451
        %v453 = vpop.f32.mrb[0].mxu0
        %454 = vmatprep.mubr.bf16.mxu0 0
        %455 = vmatmul.mubr.bf16.gmra.mrb[0].mxu0 %v401
        %v456 = vpop.f32.mrb[0].mxu0
        %v457 = vadd.f32 0.0, %v456
        %v458 = vpop.f32.mrb[0].mxu0
        %v459 = vpop.f32.mrb[0].mxu0
        %v460 = vadd.f32 0.0, %v459
        %v461 = vpop.f32.mrb[0].mxu0
        %462 = vmatprep.mubr.bf16.mxu0 0
        %463 = vmatmul.mubr.bf16.gmra.mrb[0].mxu0 %v404
        %v464 = vpop.f32.mrb[0].mxu0
        %v465 = vadd.f32 0.0, %v464
        %v466 = vpop.f32.mrb[0].mxu0
        %v467 = vpop.f32.mrb[0].mxu0
        %v468 = vadd.f32 0.0, %v467
        %v469 = vpop.f32.mrb[0].mxu0
        %470 = vdwg.mxu0
        %v471 = vpack.c.bf16 %v444, %v441
        %v472 = vpack.c.bf16 %v452, %v449
        %v473 = vpack.c.bf16 %v460, %v457
        %v474 = vpack.c.bf16 %v468, %v465
        %v475 = vld [vmem:[#allocation2] sm:$0xff]
        %v476 = vld [vmem:[#allocation2 + $0x8] sm:$0xff]
        %v477 = vld [vmem:[#allocation2 + $0x10] sm:$0xff]
        %v478 = vld [vmem:[#allocation2 + $0x18] sm:$0xff]
        %v479 = vld [vmem:[#allocation2 + $0x20] sm:$0xff]
        %v480 = vld [vmem:[#allocation2 + $0x28] sm:$0xff]
        %v481 = vld [vmem:[#allocation2 + $0x30] sm:$0xff]
        %v482 = vld [vmem:[#allocation2 + $0x38] sm:$0xff]
        %v483 = vld [vmem:[#allocation2 + $0x40] sm:$0xff]
        %v484 = vld [vmem:[#allocation2 + $0x48] sm:$0xff]
        %v485 = vld [vmem:[#allocation2 + $0x50] sm:$0xff]
        %v486 = vld [vmem:[#allocation2 + $0x58] sm:$0xff]
        %v487 = vld [vmem:[#allocation2 + $0x60] sm:$0xff]
        %v488 = vld [vmem:[#allocation2 + $0x68] sm:$0xff]
        %v489 = vld [vmem:[#allocation2 + $0x70] sm:$0xff]
        %v490 = vld [vmem:[#allocation2 + $0x78] sm:$0xff]
        %v491 = vld [vmem:[#allocation2 + $0x80] sm:$0xff]
        %v492 = vld [vmem:[#allocation2 + $0x88] sm:$0xff]
        %v493 = vld [vmem:[#allocation2 + $0x90] sm:$0xff]
        %v494 = vld [vmem:[#allocation2 + $0x98] sm:$0xff]
        %v495 = vld [vmem:[#allocation2 + $0xa0] sm:$0xff]
        %v496 = vld [vmem:[#allocation2 + $0xa8] sm:$0xff]
        %v497 = vld [vmem:[#allocation2 + $0xb0] sm:$0xff]
        %v498 = vld [vmem:[#allocation2 + $0xb8] sm:$0xff]
        %v499 = vld [vmem:[#allocation2 + $0xc0] sm:$0xff]
        %v500 = vld [vmem:[#allocation2 + $0xc8] sm:$0xff]
        %v501 = vld [vmem:[#allocation2 + $0xd0] sm:$0xff]
        %v502 = vld [vmem:[#allocation2 + $0xd8] sm:$0xff]
        %v503 = vld [vmem:[#allocation2 + $0xe0] sm:$0xff]
        %v504 = vld [vmem:[#allocation2 + $0xe8] sm:$0xff]
        %v505 = vld [vmem:[#allocation2 + $0xf0] sm:$0xff]
        %v506 = vld [vmem:[#allocation2 + $0xf8] sm:$0xff]
        %v539 = vunpack.c.l.b16 %v475
        %v540 = vunpack.c.h.b16 %v475
        %v541 = vunpack.c.l.b16 %v476
        %v542 = vunpack.c.h.b16 %v476
        %v543 = vunpack.c.l.b16 %v477
        %v544 = vunpack.c.h.b16 %v477
        %v545 = vunpack.c.l.b16 %v478
        %v546 = vunpack.c.h.b16 %v478
        %v547 = vunpack.c.l.b16 %v479
        %v548 = vunpack.c.h.b16 %v479
        %v549 = vunpack.c.l.b16 %v480
        %v550 = vunpack.c.h.b16 %v480
        %v551 = vunpack.c.l.b16 %v481
        %v552 = vunpack.c.h.b16 %v481
        %v553 = vunpack.c.l.b16 %v482
        %v554 = vunpack.c.h.b16 %v482
        %v555 = vunpack.c.l.b16 %v483
        %v556 = vunpack.c.h.b16 %v483
        %v557 = vunpack.c.l.b16 %v484
        %v558 = vunpack.c.h.b16 %v484
        %v559 = vunpack.c.l.b16 %v485
        %v560 = vunpack.c.h.b16 %v485
        %v561 = vunpack.c.l.b16 %v486
        %v562 = vunpack.c.h.b16 %v486
        %v563 = vunpack.c.l.b16 %v487
        %v564 = vunpack.c.h.b16 %v487
        %v565 = vunpack.c.l.b16 %v488
        %v566 = vunpack.c.h.b16 %v488
        %v567 = vunpack.c.l.b16 %v489
        %v568 = vunpack.c.h.b16 %v489
        %v569 = vunpack.c.l.b16 %v490
        %v570 = vunpack.c.h.b16 %v490
        %v571 = vunpack.c.l.b16 %v491
        %v572 = vunpack.c.h.b16 %v491
        %v573 = vunpack.c.l.b16 %v492
        %v574 = vunpack.c.h.b16 %v492
        %v575 = vunpack.c.l.b16 %v493
        %v576 = vunpack.c.h.b16 %v493
        %v577 = vunpack.c.l.b16 %v494
        %v578 = vunpack.c.h.b16 %v494
        %v579 = vunpack.c.l.b16 %v495
        %v580 = vunpack.c.h.b16 %v495
        %v581 = vunpack.c.l.b16 %v496
        %v582 = vunpack.c.h.b16 %v496
        %v583 = vunpack.c.l.b16 %v497
        %v584 = vunpack.c.h.b16 %v497
        %v585 = vunpack.c.l.b16 %v498
        %v586 = vunpack.c.h.b16 %v498
        %v587 = vunpack.c.l.b16 %v499
        %v588 = vunpack.c.h.b16 %v499
        %v589 = vunpack.c.l.b16 %v500
        %v590 = vunpack.c.h.b16 %v500
        %v591 = vunpack.c.l.b16 %v501
        %v592 = vunpack.c.h.b16 %v501
        %v593 = vunpack.c.l.b16 %v502
        %v594 = vunpack.c.h.b16 %v502
        %v595 = vunpack.c.l.b16 %v503
        %v596 = vunpack.c.h.b16 %v503
        %v597 = vunpack.c.l.b16 %v504
        %v598 = vunpack.c.h.b16 %v504
        %v599 = vunpack.c.l.b16 %v505
        %v600 = vunpack.c.h.b16 %v505
        %v601 = vunpack.c.l.b16 %v506
        %v602 = vunpack.c.h.b16 %v506
        %v603 = vpack.c.b16 %v543, %v539
        %v604 = vpack.c.b16 %v544, %v540
        %v605 = vpack.c.b16 %v545, %v541
        %v606 = vpack.c.b16 %v546, %v542
        %v607 = vpack.c.b16 %v551, %v547
        %v608 = vpack.c.b16 %v552, %v548
        %v609 = vpack.c.b16 %v553, %v549
        %v610 = vpack.c.b16 %v554, %v550
        %v611 = vpack.c.b16 %v559, %v555
        %v612 = vpack.c.b16 %v560, %v556
        %v613 = vpack.c.b16 %v561, %v557
        %v614 = vpack.c.b16 %v562, %v558
        %v615 = vpack.c.b16 %v567, %v563
        %v616 = vpack.c.b16 %v568, %v564
        %v617 = vpack.c.b16 %v569, %v565
        %v618 = vpack.c.b16 %v570, %v566
        %v619 = vpack.c.b16 %v575, %v571
        %v620 = vpack.c.b16 %v576, %v572
        %v621 = vpack.c.b16 %v577, %v573
        %v622 = vpack.c.b16 %v578, %v574
        %v623 = vpack.c.b16 %v583, %v579
        %v624 = vpack.c.b16 %v584, %v580
        %v625 = vpack.c.b16 %v585, %v581
        %v626 = vpack.c.b16 %v586, %v582
        %v627 = vpack.c.b16 %v591, %v587
        %v628 = vpack.c.b16 %v592, %v588
        %v629 = vpack.c.b16 %v593, %v589
        %v630 = vpack.c.b16 %v594, %v590
        %v631 = vpack.c.b16 %v599, %v595
        %v632 = vpack.c.b16 %v600, %v596
        %v633 = vpack.c.b16 %v601, %v597
        %v634 = vpack.c.b16 %v602, %v598
        %667 = vmatprep.subr.bf16.mxu0 %v604
        %668 = vmatpush1.bf16.msra.mxu0 %v603
        %669 = vmatprep.subr.bf16.mxu0 %v608
        %670 = vmatpush1.bf16.msra.mxu0 %v607
        %671 = vmatprep.subr.bf16.mxu0 %v612
        %672 = vmatpush1.bf16.msra.mxu0 %v611
        %673 = vmatprep.subr.bf16.mxu0 %v616
        %674 = vmatpush1.bf16.msra.mxu0 %v615
        %675 = vmatprep.subr.bf16.mxu0 %v620
        %676 = vmatpush1.bf16.msra.mxu0 %v619
        %677 = vmatprep.subr.bf16.mxu0 %v624
        %678 = vmatpush1.bf16.msra.mxu0 %v623
        %679 = vmatprep.subr.bf16.mxu0 %v628
        %680 = vmatpush1.bf16.msra.mxu0 %v627
        %681 = vmatprep.subr.bf16.mxu0 %v632
        %682 = vmatpush1.bf16.msra.mxu0 %v631
        %683 = vmatprep.subr.bf16.mxu0 0
        %684 = vmatpush1.bf16.msra.mxu0 0
        %685 = vmatprep.subr.bf16.mxu0 0
        %686 = vmatpush1.bf16.msra.mxu0 0
        %687 = vmatprep.subr.bf16.mxu0 0
        %688 = vmatpush1.bf16.msra.mxu0 0
        %689 = vmatprep.subr.bf16.mxu0 0
        %690 = vmatpush1.bf16.msra.mxu0 0
        %691 = vmatprep.subr.bf16.mxu0 0
        %692 = vmatpush1.bf16.msra.mxu0 0
        %693 = vmatprep.subr.bf16.mxu0 0
        %694 = vmatpush1.bf16.msra.mxu0 0
        %695 = vmatprep.subr.bf16.mxu0 0
        %696 = vmatpush1.bf16.msra.mxu0 0
        %697 = vmatprep.subr.bf16.mxu0 0
        %698 = vmatpush1.bf16.msra.mxu0 0
        %699 = vmatprep.mubr.bf16.mxu0 0
        %700 = vmatmul.mubr.bf16.gmra.mrb[0].mxu0 %v471
        %v701 = vpop.f32.mrb[0].mxu0
        %v702 = vadd.f32 0.0, %v701
        %v703 = vpop.f32.mrb[0].mxu0
        %v704 = vadd.f32 0.0, %v703
        %v705 = vpop.f32.mrb[0].mxu0
        %v706 = vadd.f32 0.0, %v705
        %v707 = vpop.f32.mrb[0].mxu0
        %v708 = vadd.f32 0.0, %v707
        %709 = vmatprep.mubr.bf16.mxu0 0
        %710 = vmatmul.mubr.bf16.gmra.mrb[0].mxu0 %v472
        %v711 = vpop.f32.mrb[0].mxu0
        %v712 = vadd.f32 0.0, %v711
        %v713 = vpop.f32.mrb[0].mxu0
        %v714 = vadd.f32 0.0, %v713
        %v715 = vpop.f32.mrb[0].mxu0
        %v716 = vadd.f32 0.0, %v715
        %v717 = vpop.f32.mrb[0].mxu0
        %v718 = vadd.f32 0.0, %v717
        %719 = vmatprep.mubr.bf16.mxu0 0
        %720 = vmatmul.mubr.bf16.gmra.mrb[0].mxu0 %v473
        %v721 = vpop.f32.mrb[0].mxu0
        %v722 = vadd.f32 0.0, %v721
        %v723 = vpop.f32.mrb[0].mxu0
        %v724 = vadd.f32 0.0, %v723
        %v725 = vpop.f32.mrb[0].mxu0
        %v726 = vadd.f32 0.0, %v725
        %v727 = vpop.f32.mrb[0].mxu0
        %v728 = vadd.f32 0.0, %v727
        %729 = vmatprep.mubr.bf16.mxu0 0
        %730 = vmatmul.mubr.bf16.gmra.mrb[0].mxu0 %v474
        %v731 = vpop.f32.mrb[0].mxu0
        %v732 = vadd.f32 0.0, %v731
        %v733 = vpop.f32.mrb[0].mxu0
        %v734 = vadd.f32 0.0, %v733
        %v735 = vpop.f32.mrb[0].mxu0
        %v736 = vadd.f32 0.0, %v735
        %v737 = vpop.f32.mrb[0].mxu0
        %v738 = vadd.f32 0.0, %v737
        %739 = vdwg.mxu0
        %740 = vmatprep.subr.bf16.mxu0 %v606
        %741 = vmatpush1.bf16.msra.mxu0 %v605
        %742 = vmatprep.subr.bf16.mxu0 %v610
        %743 = vmatpush1.bf16.msra.mxu0 %v609
        %744 = vmatprep.subr.bf16.mxu0 %v614
        %745 = vmatpush1.bf16.msra.mxu0 %v613
        %746 = vmatprep.subr.bf16.mxu0 %v618
        %747 = vmatpush1.bf16.msra.mxu0 %v617
        %748 = vmatprep.subr.bf16.mxu0 %v622
        %749 = vmatpush1.bf16.msra.mxu0 %v621
        %750 = vmatprep.subr.bf16.mxu0 %v626
        %751 = vmatpush1.bf16.msra.mxu0 %v625
        %752 = vmatprep.subr.bf16.mxu0 %v630
        %753 = vmatpush1.bf16.msra.mxu0 %v629
        %754 = vmatprep.subr.bf16.mxu0 %v634
        %755 = vmatpush1.bf16.msra.mxu0 %v633
        %756 = vmatprep.subr.bf16.mxu0 0
        %757 = vmatpush1.bf16.msra.mxu0 0
        %758 = vmatprep.subr.bf16.mxu0 0
        %759 = vmatpush1.bf16.msra.mxu0 0
        %760 = vmatprep.subr.bf16.mxu0 0
        %761 = vmatpush1.bf16.msra.mxu0 0
        %762 = vmatprep.subr.bf16.mxu0 0
        %763 = vmatpush1.bf16.msra.mxu0 0
        %764 = vmatprep.subr.bf16.mxu0 0
        %765 = vmatpush1.bf16.msra.mxu0 0
        %766 = vmatprep.subr.bf16.mxu0 0
        %767 = vmatpush1.bf16.msra.mxu0 0
        %768 = vmatprep.subr.bf16.mxu0 0
        %769 = vmatpush1.bf16.msra.mxu0 0
        %770 = vmatprep.subr.bf16.mxu0 0
        %771 = vmatpush1.bf16.msra.mxu0 0
        %772 = vmatprep.mubr.bf16.mxu0 0
        %773 = vmatmul.mubr.bf16.gmra.mrb[0].mxu0 %v471
        %v774 = vpop.f32.mrb[0].mxu0
        %v775 = vadd.f32 0.0, %v774
        %v776 = vpop.f32.mrb[0].mxu0
        %v777 = vadd.f32 0.0, %v776
        %v778 = vpop.f32.mrb[0].mxu0
        %v779 = vadd.f32 0.0, %v778
        %v780 = vpop.f32.mrb[0].mxu0
        %v781 = vadd.f32 0.0, %v780
        %782 = vmatprep.mubr.bf16.mxu0 0
        %783 = vmatmul.mubr.bf16.gmra.mrb[0].mxu0 %v472
        %v784 = vpop.f32.mrb[0].mxu0
        %v785 = vadd.f32 0.0, %v784
        %v786 = vpop.f32.mrb[0].mxu0
        %v787 = vadd.f32 0.0, %v786
        %v788 = vpop.f32.mrb[0].mxu0
        %v789 = vadd.f32 0.0, %v788
        %v790 = vpop.f32.mrb[0].mxu0
        %v791 = vadd.f32 0.0, %v790
        %792 = vmatprep.mubr.bf16.mxu0 0
        %793 = vmatmul.mubr.bf16.gmra.mrb[0].mxu0 %v473
        %v794 = vpop.f32.mrb[0].mxu0
        %v795 = vadd.f32 0.0, %v794
        %v796 = vpop.f32.mrb[0].mxu0
        %v797 = vadd.f32 0.0, %v796
        %v798 = vpop.f32.mrb[0].mxu0
        %v799 = vadd.f32 0.0, %v798
        %v800 = vpop.f32.mrb[0].mxu0
        %v801 = vadd.f32 0.0, %v800
        %802 = vmatprep.mubr.bf16.mxu0 0
        %803 = vmatmul.mubr.bf16.gmra.mrb[0].mxu0 %v474
        %v804 = vpop.f32.mrb[0].mxu0
        %v805 = vadd.f32 0.0, %v804
        %v806 = vpop.f32.mrb[0].mxu0
        %v807 = vadd.f32 0.0, %v806
        %v808 = vpop.f32.mrb[0].mxu0
        %v809 = vadd.f32 0.0, %v808
        %v810 = vpop.f32.mrb[0].mxu0
        %v811 = vadd.f32 0.0, %v810
        %812 = vdwg.mxu0
        %v813 = vunpack.c.h.b16 %v333
        %v814 = vunpack.c.h.b16 %v334
        %v815 = vunpack.c.h.b16 %v335
        %v816 = vunpack.c.h.b16 %v336
        %v817 = vpack.c.b16 %v814, %v813
        %v818 = vpack.c.b16 %v816, %v815
        %v827 = vunpack.c.l.b16 %v353
        %v828 = vunpack.c.l.b16 %v354
        %v829 = vunpack.c.l.b16 %v355
        %v830 = vunpack.c.l.b16 %v356
        %v831 = vunpack.c.l.b16 %v357
        %v832 = vunpack.c.l.b16 %v358
        %v833 = vunpack.c.l.b16 %v359
        %v834 = vunpack.c.l.b16 %v360
        %v835 = vpack.c.b16 %v828, %v827
        %v836 = vpack.c.b16 %v830, %v829
        %v837 = vpack.c.b16 %v832, %v831
        %v838 = vpack.c.b16 %v834, %v833
        %vm843 = vcmask 523264
        %v845 = vsel %vm843, %v817, 0
        %v848 = vsel %vm843, %v818, 0
        %850 = vmatprep.subr.bf16.mxu0 0
        %851 = vmatpush1.bf16.msra.mxu0 %v835
        %852 = vmatprep.subr.bf16.mxu0 0
        %853 = vmatpush1.bf16.msra.mxu0 %v836
        %854 = vmatprep.subr.bf16.mxu0 0
        %855 = vmatpush1.bf16.msra.mxu0 %v837
        %856 = vmatprep.subr.bf16.mxu0 0
        %857 = vmatpush1.bf16.msra.mxu0 %v838
        %858 = vmatprep.subr.bf16.mxu0 0
        %859 = vmatpush1.bf16.msra.mxu0 0
        %860 = vmatprep.subr.bf16.mxu0 0
        %861 = vmatpush1.bf16.msra.mxu0 0
        %862 = vmatprep.subr.bf16.mxu0 0
        %863 = vmatpush1.bf16.msra.mxu0 0
        %864 = vmatprep.subr.bf16.mxu0 0
        %865 = vmatpush1.bf16.msra.mxu0 0
        %866 = vmatprep.subr.bf16.mxu0 0
        %867 = vmatpush1.bf16.msra.mxu0 0
        %868 = vmatprep.subr.bf16.mxu0 0
        %869 = vmatpush1.bf16.msra.mxu0 0
        %870 = vmatprep.subr.bf16.mxu0 0
        %871 = vmatpush1.bf16.msra.mxu0 0
        %872 = vmatprep.subr.bf16.mxu0 0
        %873 = vmatpush1.bf16.msra.mxu0 0
        %874 = vmatprep.subr.bf16.mxu0 0
        %875 = vmatpush1.bf16.msra.mxu0 0
        %876 = vmatprep.subr.bf16.mxu0 0
        %877 = vmatpush1.bf16.msra.mxu0 0
        %878 = vmatprep.subr.bf16.mxu0 0
        %879 = vmatpush1.bf16.msra.mxu0 0
        %880 = vmatprep.subr.bf16.mxu0 0
        %881 = vmatpush1.bf16.msra.mxu0 0
        %882 = vmatprep.mubr.bf16.mxu0 0
        %883 = vmatmul.mubr.bf16.gmra.mrb[0].mxu0 %v845
        %v884 = vpop.f32.mrb[0].mxu0
        %v885 = vadd.f32 0.0, %v884
        %v886 = vpop.f32.mrb[0].mxu0
        %v887 = vpop.f32.mrb[0].mxu0
        %v888 = vadd.f32 0.0, %v887
        %v889 = vpop.f32.mrb[0].mxu0
        %890 = vmatprep.mubr.bf16.mxu0 0
        %891 = vmatmul.mubr.bf16.gmra.mrb[0].mxu0 %v848
        %v892 = vpop.f32.mrb[0].mxu0
        %v893 = vadd.f32 0.0, %v892
        %v894 = vpop.f32.mrb[0].mxu0
        %v895 = vpop.f32.mrb[0].mxu0
        %v896 = vadd.f32 0.0, %v895
        %v897 = vpop.f32.mrb[0].mxu0
        %898 = vdwg.mxu0
        %v899 = vpack.c.bf16 %v888, %v885
        %v900 = vpack.c.bf16 %v896, %v893
        %v909 = vunpack.c.l.b16 %v345
        %v910 = vunpack.c.l.b16 %v346
        %v911 = vunpack.c.l.b16 %v347
        %v912 = vunpack.c.l.b16 %v348
        %v913 = vunpack.c.l.b16 %v349
        %v914 = vunpack.c.l.b16 %v350
        %v915 = vunpack.c.l.b16 %v351
        %v916 = vunpack.c.l.b16 %v352
        %v917 = vpack.c.b16 %v910, %v909
        %v918 = vpack.c.b16 %v912, %v911
        %v919 = vpack.c.b16 %v914, %v913
        %v920 = vpack.c.b16 %v916, %v915
        %v922 = vsel %vm393, %v917, 0
        %v925 = vsel %vm393, %v918, 0
        %v928 = vsel %vm393, %v919, 0
        %v931 = vsel %vm393, %v920, 0
        %933 = vmatprep.subr.bf16.mxu0 0
        %934 = vmatpush1.bf16.msra.mxu0 %v899
        %935 = vmatprep.subr.bf16.mxu0 0
        %936 = vmatpush1.bf16.msra.mxu0 %v900
        %937 = vmatprep.subr.bf16.mxu0 0
        %938 = vmatpush1.bf16.msra.mxu0 0
        %939 = vmatprep.subr.bf16.mxu0 0
        %940 = vmatpush1.bf16.msra.mxu0 0
        %941 = vmatprep.subr.bf16.mxu0 0
        %942 = vmatpush1.bf16.msra.mxu0 0
        %943 = vmatprep.subr.bf16.mxu0 0
        %944 = vmatpush1.bf16.msra.mxu0 0
        %945 = vmatprep.subr.bf16.mxu0 0
        %946 = vmatpush1.bf16.msra.mxu0 0
        %947 = vmatprep.subr.bf16.mxu0 0
        %948 = vmatpush1.bf16.msra.mxu0 0
        %949 = vmatprep.subr.bf16.mxu0 0
        %950 = vmatpush1.bf16.msra.mxu0 0
        %951 = vmatprep.subr.bf16.mxu0 0
        %952 = vmatpush1.bf16.msra.mxu0 0
        %953 = vmatprep.subr.bf16.mxu0 0
        %954 = vmatpush1.bf16.msra.mxu0 0
        %955 = vmatprep.subr.bf16.mxu0 0
        %956 = vmatpush1.bf16.msra.mxu0 0
        %957 = vmatprep.subr.bf16.mxu0 0
        %958 = vmatpush1.bf16.msra.mxu0 0
        %959 = vmatprep.subr.bf16.mxu0 0
        %960 = vmatpush1.bf16.msra.mxu0 0
        %961 = vmatprep.subr.bf16.mxu0 0
        %962 = vmatpush1.bf16.msra.mxu0 0
        %963 = vmatprep.subr.bf16.mxu0 0
        %964 = vmatpush1.bf16.msra.mxu0 0
        %965 = vmatprep.mubr.bf16.mxu0 0
        %966 = vmatmul.mubr.bf16.gmra.mrb[0].mxu0 %v922
        %v967 = vpop.f32.mrb[0].mxu0
        %v968 = vadd.f32 0.0, %v967
        %v969 = vpop.f32.mrb[0].mxu0
        %v970 = vpop.f32.mrb[0].mxu0
        %v971 = vadd.f32 0.0, %v970
        %v972 = vpop.f32.mrb[0].mxu0
        %973 = vmatprep.mubr.bf16.mxu0 0
        %974 = vmatmul.mubr.bf16.gmra.mrb[0].mxu0 %v925
        %v975 = vpop.f32.mrb[0].mxu0
        %v976 = vadd.f32 0.0, %v975
        %v977 = vpop.f32.mrb[0].mxu0
        %v978 = vpop.f32.mrb[0].mxu0
        %v979 = vadd.f32 0.0, %v978
        %v980 = vpop.f32.mrb[0].mxu0
        %981 = vmatprep.mubr.bf16.mxu0 0
        %982 = vmatmul.mubr.bf16.gmra.mrb[0].mxu0 %v928
        %v983 = vpop.f32.mrb[0].mxu0
        %v984 = vadd.f32 0.0, %v983
        %v985 = vpop.f32.mrb[0].mxu0
        %v986 = vpop.f32.mrb[0].mxu0
        %v987 = vadd.f32 0.0, %v986
        %v988 = vpop.f32.mrb[0].mxu0
        %989 = vmatprep.mubr.bf16.mxu0 0
        %990 = vmatmul.mubr.bf16.gmra.mrb[0].mxu0 %v931
        %v991 = vpop.f32.mrb[0].mxu0
        %v992 = vadd.f32 0.0, %v991
        %v993 = vpop.f32.mrb[0].mxu0
        %v994 = vpop.f32.mrb[0].mxu0
        %v995 = vadd.f32 0.0, %v994
        %v996 = vpop.f32.mrb[0].mxu0
        %997 = vdwg.mxu0
        %v998 = vunpack.c.l.bf16 %v353
        %v999 = vunpack.c.l.bf16 %v354
        %v1000 = vunpack.c.l.bf16 %v355
        %v1001 = vunpack.c.l.bf16 %v356
        %v1002 = vunpack.c.l.bf16 %v357
        %v1003 = vunpack.c.l.bf16 %v358
        %v1004 = vunpack.c.l.bf16 %v359
        %v1005 = vunpack.c.l.bf16 %v360
        %v1006 = vmul.f32 %v968, %v998
        %v1007 = vmul.f32 %v971, %v999
        %v1008 = vmul.f32 %v976, %v1000
        %v1009 = vmul.f32 %v979, %v1001
        %v1010 = vmul.f32 %v984, %v1002
        %v1011 = vmul.f32 %v987, %v1003
        %v1012 = vmul.f32 %v992, %v1004
        %v1013 = vmul.f32 %v995, %v1005
        %vm1014 = vcmask 64512
        %v1015 = vsel %vm1014, %v1006, 0.0
        %1016 = vadd.xlane.f32.xlu0 %v1015
        %v1017 = vpop.xlane.xlu0 %1016
        %v1018 = vsel %vm1014, %v1007, 0.0
        %1019 = vadd.xlane.f32.xlu0 %v1018
        %v1020 = vpop.xlane.xlu0 %1019
        %v1021 = vsel %vm1014, %v1008, 0.0
        %1022 = vadd.xlane.f32.xlu0 %v1021
        %v1023 = vpop.xlane.xlu0 %1022
        %v1024 = vsel %vm1014, %v1009, 0.0
        %1025 = vadd.xlane.f32.xlu0 %v1024
        %v1026 = vpop.xlane.xlu0 %1025
        %v1027 = vsel %vm1014, %v1010, 0.0
        %1028 = vadd.xlane.f32.xlu0 %v1027
        %v1029 = vpop.xlane.xlu0 %1028
        %v1030 = vsel %vm1014, %v1011, 0.0
        %1031 = vadd.xlane.f32.xlu0 %v1030
        %v1032 = vpop.xlane.xlu0 %1031
        %v1033 = vsel %vm1014, %v1012, 0.0
        %1034 = vadd.xlane.f32.xlu0 %v1033
        %v1035 = vpop.xlane.xlu0 %1034
        %v1036 = vsel %vm1014, %v1013, 0.0
        %1037 = vadd.xlane.f32.xlu0 %v1036
        %v1038 = vpop.xlane.xlu0 %1037
        %v1039 = vld [vmem:[%s4] sm:$0xf]
        %v1041 = vsel %vm1014, %v835, 0
        %v1044 = vsel %vm1014, %v836, 0
        %v1047 = vsel %vm1014, %v837, 0
        %v1050 = vsel %vm1014, %v838, 0
        %vm1052 = vcmask 1043456
        %v1054 = vsel %vm1052, %v1039, 0
        %1056 = vmatprep.subr.bf16.mxu0 0
        %1057 = vmatpush1.bf16.msra.mxu0 %v1054
        %1058 = vmatprep.subr.bf16.mxu0 0
        %1059 = vmatpush1.bf16.msra.mxu0 0
        %1060 = vmatprep.subr.bf16.mxu0 0
        %1061 = vmatpush1.bf16.msra.mxu0 0
        %1062 = vmatprep.subr.bf16.mxu0 0
        %1063 = vmatpush1.bf16.msra.mxu0 0
        %1064 = vmatprep.subr.bf16.mxu0 0
        %1065 = vmatpush1.bf16.msra.mxu0 0
        %1066 = vmatprep.subr.bf16.mxu0 0
        %1067 = vmatpush1.bf16.msra.mxu0 0
        %1068 = vmatprep.subr.bf16.mxu0 0
        %1069 = vmatpush1.bf16.msra.mxu0 0
        %1070 = vmatprep.subr.bf16.mxu0 0
        %1071 = vmatpush1.bf16.msra.mxu0 0
        %1072 = vmatprep.subr.bf16.mxu0 0
        %1073 = vmatpush1.bf16.msra.mxu0 0
        %1074 = vmatprep.subr.bf16.mxu0 0
        %1075 = vmatpush1.bf16.msra.mxu0 0
        %1076 = vmatprep.subr.bf16.mxu0 0
        %1077 = vmatpush1.bf16.msra.mxu0 0
        %1078 = vmatprep.subr.bf16.mxu0 0
        %1079 = vmatpush1.bf16.msra.mxu0 0
        %1080 = vmatprep.subr.bf16.mxu0 0
        %1081 = vmatpush1.bf16.msra.mxu0 0
        %1082 = vmatprep.subr.bf16.mxu0 0
        %1083 = vmatpush1.bf16.msra.mxu0 0
        %1084 = vmatprep.subr.bf16.mxu0 0
        %1085 = vmatpush1.bf16.msra.mxu0 0
        %1086 = vmatprep.subr.bf16.mxu0 0
        %1087 = vmatpush1.bf16.msra.mxu0 0
        %1088 = vmatprep.mubr.bf16.mxu0 0
        %1089 = vmatmul.mubr.bf16.gmra.mrb[0].mxu0 %v1041
        %v1090 = vpop.f32.mrb[0].mxu0
        %v1091 = vadd.f32 0.0, %v1090
        %v1092 = vpop.f32.mrb[0].mxu0
        %v1093 = vpop.f32.mrb[0].mxu0
        %v1094 = vadd.f32 0.0, %v1093
        %v1095 = vpop.f32.mrb[0].mxu0
        %1096 = vmatprep.mubr.bf16.mxu0 0
        %1097 = vmatmul.mubr.bf16.gmra.mrb[0].mxu0 %v1044
        %v1098 = vpop.f32.mrb[0].mxu0
        %v1099 = vadd.f32 0.0, %v1098
        %v1100 = vpop.f32.mrb[0].mxu0
        %v1101 = vpop.f32.mrb[0].mxu0
        %v1102 = vadd.f32 0.0, %v1101
        %v1103 = vpop.f32.mrb[0].mxu0
        %1104 = vmatprep.mubr.bf16.mxu0 0
        %1105 = vmatmul.mubr.bf16.gmra.mrb[0].mxu0 %v1047
        %v1106 = vpop.f32.mrb[0].mxu0
        %v1107 = vadd.f32 0.0, %v1106
        %v1108 = vpop.f32.mrb[0].mxu0
        %v1109 = vpop.f32.mrb[0].mxu0
        %v1110 = vadd.f32 0.0, %v1109
        %v1111 = vpop.f32.mrb[0].mxu0
        %1112 = vmatprep.mubr.bf16.mxu0 0
        %1113 = vmatmul.mubr.bf16.gmra.mrb[0].mxu0 %v1050
        %v1114 = vpop.f32.mrb[0].mxu0
        %v1115 = vadd.f32 0.0, %v1114
        %v1116 = vpop.f32.mrb[0].mxu0
        %v1117 = vpop.f32.mrb[0].mxu0
        %v1118 = vadd.f32 0.0, %v1117
        %v1119 = vpop.f32.mrb[0].mxu0
        %1120 = vdwg.mxu0
        %v1121 = vrcp.pop %v1017
        %v1122 = vrcp.pop %v1020
        %v1123 = vrcp.pop %v1023
        %v1124 = vrcp.pop %v1026
        %v1125 = vrcp.pop %v1029
        %v1126 = vrcp.pop %v1032
        %v1127 = vrcp.pop %v1035
        %v1128 = vrcp.pop %v1038
        %v1129 = vmul.f32 %v1091, %v1121
        %v1130 = vmul.f32 %v1094, %v1122
        %v1131 = vmul.f32 %v1099, %v1123
        %v1132 = vmul.f32 %v1102, %v1124
        %v1133 = vmul.f32 %v1107, %v1125
        %v1134 = vmul.f32 %v1110, %v1126
        %v1135 = vmul.f32 %v1115, %v1127
        %v1136 = vmul.f32 %v1118, %v1128
        %1138 = vset.pattern.permute.xlu0 0
        %1139 = vperm.xlu0 %1138, %v1129
        %v1140 = vpop.permute.xlu0 %1139
        %1143 = vset.pattern.permute.xlu0 0
        %1144 = vperm.xlu0 %1143, %v1130
        %v1145 = vpop.permute.xlu0 %1144
        %1148 = vset.pattern.permute.xlu0 0
        %1149 = vperm.xlu0 %1148, %v1131
        %v1150 = vpop.permute.xlu0 %1149
        %1153 = vset.pattern.permute.xlu0 0
        %1154 = vperm.xlu0 %1153, %v1132
        %v1155 = vpop.permute.xlu0 %1154
        %1158 = vset.pattern.permute.xlu0 0
        %1159 = vperm.xlu0 %1158, %v1133
        %v1160 = vpop.permute.xlu0 %1159
        %1163 = vset.pattern.permute.xlu0 0
        %1164 = vperm.xlu0 %1163, %v1134
        %v1165 = vpop.permute.xlu0 %1164
        %1168 = vset.pattern.permute.xlu0 0
        %1169 = vperm.xlu0 %1168, %v1135
        %v1170 = vpop.permute.xlu0 %1169
        %1173 = vset.pattern.permute.xlu0 0
        %1174 = vperm.xlu0 %1173, %v1136
        %v1175 = vpop.permute.xlu0 %1174
        %v1177 = vmul.f32 %v1140, %v702
        %v1178 = vmul.f32 %v1145, %v706
        %v1179 = vmul.f32 %v1150, %v712
        %v1180 = vmul.f32 %v1155, %v716
        %v1181 = vmul.f32 %v1160, %v722
        %v1182 = vmul.f32 %v1165, %v726
        %v1183 = vmul.f32 %v1170, %v732
        %v1184 = vmul.f32 %v1175, %v736
        %1185 = vset.pattern.permute.xlu0 1
        %1186 = vperm.xlu0 %1185, %v1129
        %v1187 = vpop.permute.xlu0 %1186
        %1189 = vset.pattern.permute.xlu0 1
        %1190 = vperm.xlu0 %1189, %v1130
        %v1191 = vpop.permute.xlu0 %1190
        %1193 = vset.pattern.permute.xlu0 1
        %1194 = vperm.xlu0 %1193, %v1131
        %v1195 = vpop.permute.xlu0 %1194
        %1197 = vset.pattern.permute.xlu0 1
        %1198 = vperm.xlu0 %1197, %v1132
        %v1199 = vpop.permute.xlu0 %1198
        %1201 = vset.pattern.permute.xlu0 1
        %1202 = vperm.xlu0 %1201, %v1133
        %v1203 = vpop.permute.xlu0 %1202
        %1205 = vset.pattern.permute.xlu0 1
        %1206 = vperm.xlu0 %1205, %v1134
        %v1207 = vpop.permute.xlu0 %1206
        %1209 = vset.pattern.permute.xlu0 1
        %1210 = vperm.xlu0 %1209, %v1135
        %v1211 = vpop.permute.xlu0 %1210
        %1213 = vset.pattern.permute.xlu0 1
        %1214 = vperm.xlu0 %1213, %v1136
        %v1215 = vpop.permute.xlu0 %1214
        %v1217 = vmul.f32 %v1187, %v704
        %v1218 = vmul.f32 %v1191, %v708
        %v1219 = vmul.f32 %v1195, %v714
        %v1220 = vmul.f32 %v1199, %v718
        %v1221 = vmul.f32 %v1203, %v724
        %v1222 = vmul.f32 %v1207, %v728
        %v1223 = vmul.f32 %v1211, %v734
        %v1224 = vmul.f32 %v1215, %v738
        %v1225 = vadd.f32 %v1177, %v1217
        %v1226 = vadd.f32 %v1178, %v1218
        %v1227 = vadd.f32 %v1179, %v1219
        %v1228 = vadd.f32 %v1180, %v1220
        %v1229 = vadd.f32 %v1181, %v1221
        %v1230 = vadd.f32 %v1182, %v1222
        %v1231 = vadd.f32 %v1183, %v1223
        %v1232 = vadd.f32 %v1184, %v1224
        %1233 = vset.pattern.permute.xlu0 2
        %1234 = vperm.xlu0 %1233, %v1129
        %v1235 = vpop.permute.xlu0 %1234
        %1237 = vset.pattern.permute.xlu0 2
        %1238 = vperm.xlu0 %1237, %v1130
        %v1239 = vpop.permute.xlu0 %1238
        %1241 = vset.pattern.permute.xlu0 2
        %1242 = vperm.xlu0 %1241, %v1131
        %v1243 = vpop.permute.xlu0 %1242
        %1245 = vset.pattern.permute.xlu0 2
        %1246 = vperm.xlu0 %1245, %v1132
        %v1247 = vpop.permute.xlu0 %1246
        %1249 = vset.pattern.permute.xlu0 2
        %1250 = vperm.xlu0 %1249, %v1133
        %v1251 = vpop.permute.xlu0 %1250
        %1253 = vset.pattern.permute.xlu0 2
        %1254 = vperm.xlu0 %1253, %v1134
        %v1255 = vpop.permute.xlu0 %1254
        %1257 = vset.pattern.permute.xlu0 2
        %1258 = vperm.xlu0 %1257, %v1135
        %v1259 = vpop.permute.xlu0 %1258
        %1261 = vset.pattern.permute.xlu0 2
        %1262 = vperm.xlu0 %1261, %v1136
        %v1263 = vpop.permute.xlu0 %1262
        %v1265 = vmul.f32 %v1235, %v775
        %v1266 = vmul.f32 %v1239, %v779
        %v1267 = vmul.f32 %v1243, %v785
        %v1268 = vmul.f32 %v1247, %v789
        %v1269 = vmul.f32 %v1251, %v795
        %v1270 = vmul.f32 %v1255, %v799
        %v1271 = vmul.f32 %v1259, %v805
        %v1272 = vmul.f32 %v1263, %v809
        %v1273 = vadd.f32 %v1225, %v1265
        %v1274 = vadd.f32 %v1226, %v1266
        %v1275 = vadd.f32 %v1227, %v1267
        %v1276 = vadd.f32 %v1228, %v1268
        %v1277 = vadd.f32 %v1229, %v1269
        %v1278 = vadd.f32 %v1230, %v1270
        %v1279 = vadd.f32 %v1231, %v1271
        %v1280 = vadd.f32 %v1232, %v1272
        %1281 = vset.pattern.permute.xlu0 3
        %1282 = vperm.xlu0 %1281, %v1129
        %v1283 = vpop.permute.xlu0 %1282
        %1285 = vset.pattern.permute.xlu0 3
        %1286 = vperm.xlu0 %1285, %v1130
        %v1287 = vpop.permute.xlu0 %1286
        %1289 = vset.pattern.permute.xlu0 3
        %1290 = vperm.xlu0 %1289, %v1131
        %v1291 = vpop.permute.xlu0 %1290
        %1293 = vset.pattern.permute.xlu0 3
        %1294 = vperm.xlu0 %1293, %v1132
        %v1295 = vpop.permute.xlu0 %1294
        %1297 = vset.pattern.permute.xlu0 3
        %1298 = vperm.xlu0 %1297, %v1133
        %v1299 = vpop.permute.xlu0 %1298
        %1301 = vset.pattern.permute.xlu0 3
        %1302 = vperm.xlu0 %1301, %v1134
        %v1303 = vpop.permute.xlu0 %1302
        %1305 = vset.pattern.permute.xlu0 3
        %1306 = vperm.xlu0 %1305, %v1135
        %v1307 = vpop.permute.xlu0 %1306
        %1309 = vset.pattern.permute.xlu0 3
        %1310 = vperm.xlu0 %1309, %v1136
        %v1311 = vpop.permute.xlu0 %1310
        %v1313 = vmul.f32 %v1283, %v777
        %v1314 = vmul.f32 %v1287, %v781
        %v1315 = vmul.f32 %v1291, %v787
        %v1316 = vmul.f32 %v1295, %v791
        %v1317 = vmul.f32 %v1299, %v797
        %v1318 = vmul.f32 %v1303, %v801
        %v1319 = vmul.f32 %v1307, %v807
        %v1320 = vmul.f32 %v1311, %v811
        %v1321 = vadd.f32 %v1273, %v1313
        %v1322 = vadd.f32 %v1274, %v1314
        %v1323 = vadd.f32 %v1275, %v1315
        %v1324 = vadd.f32 %v1276, %v1316
        %v1325 = vadd.f32 %v1277, %v1317
        %v1326 = vadd.f32 %v1278, %v1318
        %v1327 = vadd.f32 %v1279, %v1319
        %v1328 = vadd.f32 %v1280, %v1320
        %v1329 = vld [vmem:[%s5] sm:$0xf]
        %v1330 = vld [vmem:[%s5 + $0x4] sm:$0xf]
        %v1331 = vld [vmem:[%s5 + $0x8] sm:$0xf]
        %v1332 = vld [vmem:[%s5 + $0xc] sm:$0xf]
        %v1333 = vld [vmem:[%s5 + $0x10] sm:$0xf]
        %v1334 = vld [vmem:[%s5 + $0x14] sm:$0xf]
        %v1335 = vld [vmem:[%s5 + $0x18] sm:$0xf]
        %v1336 = vld [vmem:[%s5 + $0x1c] sm:$0xf]
        %v1337 = vld [vmem:[%s5 + $0x20] sm:$0xf]
        %v1338 = vld [vmem:[%s5 + $0x24] sm:$0xf]
        %v1339 = vld [vmem:[%s5 + $0x28] sm:$0xf]
        %v1340 = vld [vmem:[%s5 + $0x2c] sm:$0xf]
        %v1341 = vld [vmem:[%s5 + $0x30] sm:$0xf]
        %v1342 = vld [vmem:[%s5 + $0x34] sm:$0xf]
        %v1343 = vld [vmem:[%s5 + $0x38] sm:$0xf]
        %v1344 = vld [vmem:[%s5 + $0x3c] sm:$0xf]
        %v1345 = vpack.c.bf16 %v1322, %v1321
        %v1346 = vpack.c.bf16 %v1324, %v1323
        %v1347 = vpack.c.bf16 %v1326, %v1325
        %v1348 = vpack.c.bf16 %v1328, %v1327
        %v1365 = vunpack.c.l.b16 %v1329
        %v1366 = vunpack.c.l.b16 %v1330
        %v1367 = vunpack.c.l.b16 %v1331
        %v1368 = vunpack.c.l.b16 %v1332
        %v1369 = vunpack.c.l.b16 %v1333
        %v1370 = vunpack.c.l.b16 %v1334
        %v1371 = vunpack.c.l.b16 %v1335
        %v1372 = vunpack.c.l.b16 %v1336
        %v1373 = vunpack.c.l.b16 %v1337
        %v1374 = vunpack.c.l.b16 %v1338
        %v1375 = vunpack.c.l.b16 %v1339
        %v1376 = vunpack.c.l.b16 %v1340
        %v1377 = vunpack.c.l.b16 %v1341
        %v1378 = vunpack.c.l.b16 %v1342
        %v1379 = vunpack.c.l.b16 %v1343
        %v1380 = vunpack.c.l.b16 %v1344
        %v1381 = vpack.c.b16 %v1366, %v1365
        %v1382 = vpack.c.b16 %v1368, %v1367
        %v1383 = vpack.c.b16 %v1370, %v1369
        %v1384 = vpack.c.b16 %v1372, %v1371
        %v1385 = vpack.c.b16 %v1374, %v1373
        %v1386 = vpack.c.b16 %v1376, %v1375
        %v1387 = vpack.c.b16 %v1378, %v1377
        %v1388 = vpack.c.b16 %v1380, %v1379
        %v1397 = vld [vmem:[%s6] sm:$0x1]
        %v1399 = vlaneseq
        %v1400 = vshrl.u32 %v1399, 7
        %v1401 = vsub.s32 0, %v1400
        %v1402 = vrot.slane %v1397, %v1401
        %1404 = vmatprep.subr.bf16.mxu0 0
        %1405 = vmatpush1.bf16.msra.mxu0 %v1381
        %1406 = vmatprep.subr.bf16.mxu0 0
        %1407 = vmatpush1.bf16.msra.mxu0 %v1382
        %1408 = vmatprep.subr.bf16.mxu0 0
        %1409 = vmatpush1.bf16.msra.mxu0 %v1383
        %1410 = vmatprep.subr.bf16.mxu0 0
        %1411 = vmatpush1.bf16.msra.mxu0 %v1384
        %1412 = vmatprep.subr.bf16.mxu0 0
        %1413 = vmatpush1.bf16.msra.mxu0 %v1385
        %1414 = vmatprep.subr.bf16.mxu0 0
        %1415 = vmatpush1.bf16.msra.mxu0 %v1386
        %1416 = vmatprep.subr.bf16.mxu0 0
        %1417 = vmatpush1.bf16.msra.mxu0 %v1387
        %1418 = vmatprep.subr.bf16.mxu0 0
        %1419 = vmatpush1.bf16.msra.mxu0 %v1388
        %1420 = vmatprep.subr.bf16.mxu0 0
        %1421 = vmatpush1.bf16.msra.mxu0 %v1345
        %1422 = vmatprep.subr.bf16.mxu0 0
        %1423 = vmatpush1.bf16.msra.mxu0 %v1346
        %1424 = vmatprep.subr.bf16.mxu0 0
        %1425 = vmatpush1.bf16.msra.mxu0 %v1347
        %1426 = vmatprep.subr.bf16.mxu0 0
        %1427 = vmatpush1.bf16.msra.mxu0 %v1348
        %1428 = vmatprep.subr.bf16.mxu0 0
        %1429 = vmatpush1.bf16.msra.mxu0 0
        %1430 = vmatprep.subr.bf16.mxu0 0
        %1431 = vmatpush1.bf16.msra.mxu0 0
        %1432 = vmatprep.subr.bf16.mxu0 0
        %1433 = vmatpush1.bf16.msra.mxu0 0
        %1434 = vmatprep.subr.bf16.mxu0 0
        %1435 = vmatpush1.bf16.msra.mxu0 0
        %1436 = vmatprep.mubr.bf16.mxu0 %v845
        %1437 = vmatmul.mubr.bf16.gmra.mrb[0].mxu0 %v389
        %v1438 = vpop.f32.mrb[0].mxu0
        %v1439 = vadd.f32 %v1402, %v1438
        %v1440 = vpop.f32.mrb[0].mxu0
        %v1441 = vpop.f32.mrb[0].mxu0
        %v1442 = vadd.f32 %v1402, %v1441
        %v1443 = vpop.f32.mrb[0].mxu0
        %1444 = vmatprep.mubr.bf16.mxu0 %v848
        %1445 = vmatmul.mubr.bf16.gmra.mrb[0].mxu0 %v390
        %v1446 = vpop.f32.mrb[0].mxu0
        %v1447 = vadd.f32 %v1402, %v1446
        %v1448 = vpop.f32.mrb[0].mxu0
        %v1449 = vpop.f32.mrb[0].mxu0
        %v1450 = vadd.f32 %v1402, %v1449
        %v1451 = vpop.f32.mrb[0].mxu0
        %1452 = vdwg.mxu0
        %1453 = vst [vmem:[%s316] sm:$0xff] %v1439
        %1454 = vst [vmem:[%s316 + $0x8] sm:$0xff] %v1442
        %1455 = vst [vmem:[%s316 + $0x10] sm:$0xff] %v1447
        %1456 = vst [vmem:[%s316 + $0x18] sm:$0xff] %v1450
        %s1457 = sand.u32 %s192, 1
        %s1458 = scalar_lea.sflag [#allocation4], %s1457
        %s1459 = sand.u32 %s192, 1
        %s1460 = smul.addr %s1459, 32
        %s1461 = scalar_lea.vmem [#allocation5], %s1460
        // Predicated region
        $region53: #{tpu_custom_call.1} parent=47 // pred_check
          %p1462 = pneg %p202
        $region54: #{tpu_custom_call.1} parent=47 // pred_check_branch
          %1464 = sbr.rel (%p1462) target = $region56
        $region55: #{tpu_custom_call.1} parent=47 // pred_region
          %s1466 = ssub.s32 512, 512
          %1467 = vsyncadd %s1458, %s1466
          %s1468 = smul.addr %s22, 4
          %s1469 = smul.addr %s1468, 128
          %s1470 = scalar_lea.hbm %s7, %s1469
          %s1471 = sshll.u32 %s1461, 4
          %s1472 = int_to_ptr.vmem [resolvable:$true] %s1471
          %1477 = dma.vmem_to_hbm [thread:$0]  %s1472, 512, %s1470, %s1458, 128, 128, 8
        $region56: #{tpu_custom_call.1} parent=47 // pred_fallthru
          _
      $region48: #{tpu_custom_call.1} parent=5 // pred_fallthru
        _
      %p1478 = scmp.le.s32.totalorder 2, %s17
      // Predicated region
      $region57: #{tpu_custom_call.1} parent=5 // pred_check
        %p1479 = pneg %p1478
      $region58: #{tpu_custom_call.1} parent=5 // pred_check_branch
        %1481 = sbr.rel (%p1479) target = $region60
      $region59: #{tpu_custom_call.1} parent=5 // pred_region
        %s1482 = ssub.s32 %s17, 2
        // Predicated region
        $region61: #{tpu_custom_call.1} parent=59 // pred_check
          %p1483 = pneg %p208
        $region62: #{tpu_custom_call.1} parent=59 // pred_check_branch
          %1485 = sbr.rel (%p1483) target = $region64
        $region63: #{tpu_custom_call.1} parent=59 // pred_region
          %s1486 = sand.u32 %s193, 1
          %s1487 = scalar_lea.sflag [#allocation4], %s1486
          %s1488 = sand.u32 %s193, 1
          %s1489 = smul.addr %s1488, 32
          %s1490 = scalar_lea.vmem [#allocation5], %s1489
          %1491 = dma.done %s1487, 512
        $region64: #{tpu_custom_call.1} parent=59 // pred_fallthru
          _
      $region60: #{tpu_custom_call.1} parent=5 // pred_fallthru
        _
    $region6: #{tpu_custom_call.1} parent=1 // loop_footer
      %s21 = sadd.s32 1, %s17
    $region7: #{tpu_custom_call.1} parent=1 // loop_footer_branch
      %16 = sbr.rel target = $region3
    $region8: #{tpu_custom_call.1} parent=1 // loop_exit
      _
    %1492 = vsyncpa [#allocation3], 1
    %s1493 = scalar_lea.sflag [#allocation3], 1
    %1494 = vsyncpa %s1493, 1
    %1495 = vsyncpa [#allocation4], 1
    %s1496 = scalar_lea.sflag [#allocation4], 1
    %1497 = vsyncpa %s1496, 1

</llo_original>
